<compile_context>
chip_gen: v7x
topology: tpu7x:2x2x1
jax: 0.10.0
libtpu: 0.0.40
codegen_flags: <defaults>
</compile_context>

<pallas_src>
import jax
import jax.numpy as jnp
from jax.experimental import pallas as pl
from jax.experimental.pallas import tpu as pltpu

# --- module hyper-parameters (module __init__ globals) ---
H_DIM = 32
BOTTLENECK_DIM = 32
EMBEDDING_DIM = 16
MAX_PEDS = 8
MLP_HIDDEN = 512          # fixed 512 hidden in mlp_pre_attn_dims

TILE_PEDS = 16            # peds per grid step -> matmul M = 16*8 = 128
                          # (use 32 on v6e/v7x for M=256 when npeds is large)


def social_attention_kernel(h_ref, rel_ref, w1h_ref, wrel_ref, b1_ref,
                            w2_ref, b2_ref, wattn_ref, battn_ref, out_ref):
    # Per-grid-step shapes:
    #   h_ref    : (TILE_PEDS, MAX_PEDS, H_DIM)   f32
    #   rel_ref  : (TILE_PEDS, MAX_PEDS, 2)       f32
    #   w1h_ref  : (H_DIM, MLP_HIDDEN)            bf16
    #   wrel_ref : (2, MLP_HIDDEN)                f32   (Wse @ W1_e)
    #   b1_ref   : (1, MLP_HIDDEN)                f32   (b1 + bse @ W1_e)
    #   w2_ref   : (MLP_HIDDEN, BOTTLENECK_DIM)   bf16
    #   b2_ref   : (1, BOTTLENECK_DIM)            f32
    #   wattn_ref: (MAX_PEDS, BOTTLENECK_DIM, MAX_PEDS)  f32   [p, b, m]
    #   battn_ref: (1, MAX_PEDS)                  f32
    #   out_ref  : (TILE_PEDS, BOTTLENECK_DIM)    f32
    T, MP = TILE_PEDS, MAX_PEDS

    # ---- layer 1: relu(h @ W1_h + rel @ W_rel + b1')   (concat folded away)
    h_flat = h_ref[...].reshape(T * MP, H_DIM)              # (128, 32)
    rel_flat = rel_ref[...].reshape(T * MP, 2)               # (128, 2)

    pre1 = jnp.dot(h_flat.astype(jnp.bfloat16), w1h_ref[...],
                   preferred_element_type=jnp.float32)       # (128, 512) f32 acc
    wrel = wrel_ref[...]
    pre1 = (pre1
            + rel_flat[:, 0:1] * wrel[0:1, :]
            + rel_flat[:, 1:2] * wrel[1:2, :]
            + b1_ref[...])
    h1 = jnp.maximum(pre1, 0.0)                              # (128, 512)

    # ---- layer 2
    h2 = jnp.maximum(
        jnp.dot(h1.astype(jnp.bfloat16), w2_ref[...],
                preferred_element_type=jnp.float32) + b2_ref[...],
        0.0)                                                 # (128, BN)
    h2_3d = h2.reshape(T, MP, BOTTLENECK_DIM)                # (T, MP, BN)

    # ---- attention logits: logits[t, m] = sum_{p,b} h2[t,p,b] * Wattn[p*BN+b, m]
    # Unrolled over ped slot p: small MXU dots (K=32), no sublane->lane relayout.
    h2_slices = [h2_3d[:, p, :] for p in range(MP)]          # (T, BN) each
    acc = jnp.zeros((T, MP), jnp.float32)
    for p in range(MP):
        acc = acc + jnp.dot(h2_slices[p], wattn_ref[p],
                            preferred_element_type=jnp.float32)
    logits = acc + battn_ref[...]                            # (T, MP)

    # ---- softmax over ped slots (single 2-D op per tile, EUP exp/recip)
    mx = jnp.max(logits, axis=1, keepdims=True)
    e = jnp.exp(logits - mx)
    w = e * pl.reciprocal(jnp.sum(e, axis=1, keepdims=True), approx=True)

    # ---- weighted pooling over ped slots (reuse h2 slices, VPU FMAs)
    out = jnp.zeros((T, BOTTLENECK_DIM), jnp.float32)
    for p in range(MP):
        out = out + h2_slices[p] * w[:, p:p + 1]
    out_ref[...] = out


def _prepare_params(params):
    """Fold the spatial embedding into W1/b1 and pre-arrange the attn weight."""
    wse, bse, w1, b1, w2, b2, wattn, battn = params
    w1_h = w1[:H_DIM, :]                          # (32, 512)
    w1_e = w1[H_DIM:, :]                          # (16, 512)
    w_rel = wse @ w1_e                            # (2, 512)
    b1_fused = (b1 + bse @ w1_e).reshape(1, MLP_HIDDEN)
    wattn_pbm = wattn.reshape(MAX_PEDS, BOTTLENECK_DIM, MAX_PEDS)   # [p, b, m]
    return (w1_h.astype(jnp.bfloat16),
            w_rel.astype(jnp.float32),
            b1_fused.astype(jnp.float32),
            w2.astype(jnp.bfloat16),
            b2.reshape(1, BOTTLENECK_DIM).astype(jnp.float32),
            wattn_pbm.astype(jnp.float32),
            battn.reshape(1, MAX_PEDS).astype(jnp.float32))


def social_attention(h_states, end_pos, params):
    """h_states: (npeds, MAX_PEDS, H_DIM) f32, end_pos: (npeds, MAX_PEDS, 2) f32."""
    npeds = h_states.shape[0]
    w1h, wrel, b1f, w2b, b2r, wattn_pbm, battn_r = _prepare_params(params)

    # relative positions wrt slot 0 (trivial XLA prep; kernel consumes rel)
    rel = end_pos - end_pos[:, 0:1, :]

    # pad ped count to a multiple of TILE_PEDS (padded rows are discarded)
    n_tiles = pl.cdiv(npeds, TILE_PEDS)
    n_pad = n_tiles * TILE_PEDS
    if n_pad != npeds:
        pad = ((0, n_pad - npeds), (0, 0), (0, 0))
        h_states = jnp.pad(h_states, pad)
        rel = jnp.pad(rel, pad)

    def const_spec(arr):
        nd = arr.ndim
        return pl.BlockSpec(arr.shape, lambda i, _nd=nd: (0,) * _nd)

    out = pl.pallas_call(
        social_attention_kernel,
        out_shape=jax.ShapeDtypeStruct((n_pad, BOTTLENECK_DIM), jnp.float32),
        grid=(n_tiles,),
        in_specs=[
            pl.BlockSpec((TILE_PEDS, MAX_PEDS, H_DIM), lambda i: (i, 0, 0)),
            pl.BlockSpec((TILE_PEDS, MAX_PEDS, 2), lambda i: (i, 0, 0)),
            const_spec(w1h),
            const_spec(wrel),
            const_spec(b1f),
            const_spec(w2b),
            const_spec(b2r),
            const_spec(wattn_pbm),
            const_spec(battn_r),
        ],
        out_specs=pl.BlockSpec((TILE_PEDS, BOTTLENECK_DIM), lambda i: (i, 0)),
        compiler_params=pltpu.CompilerParams(dimension_semantics=("parallel",)),
    )(h_states, rel, w1h, wrel, b1f, w2b, b2r, wattn_pbm, battn_r)
    return out[:npeds]                            # (npeds, BN)


def social_attention_reference(h_states, end_pos, params):
    wse, bse, w1, b1, w2, b2, wattn, battn = params
    npeds = h_states.shape[0]
    rel = end_pos - end_pos[:, 0:1, :]
    emb = rel @ wse + bse                                     # (npeds, MP, EMB)
    x = jnp.concatenate([h_states, emb], axis=2)
    h1 = jax.nn.relu(x @ w1 + b1)
    h2 = jax.nn.relu(h1 @ w2 + b2)                            # (npeds, MP, BN)
    logits = h2.reshape(npeds, -1) @ wattn + battn            # (npeds, MP)
    w = jax.nn.softmax(logits, axis=1).reshape(npeds, MAX_PEDS, 1)
    return jnp.sum(h2 * w, axis=1)                            # (npeds, BN)


def init_params(key):
    ks = jax.random.split(key, 8)
    def lin(kw, kb, fan_in, fan_out):
        s = 1.0 / jnp.sqrt(fan_in)
        w = jax.random.uniform(kw, (fan_in, fan_out), jnp.float32, -s, s)
        b = jax.random.uniform(kb, (fan_out,), jnp.float32, -s, s)
        return w, b
    wse, bse = lin(ks[0], ks[1], 2, EMBEDDING_DIM)
    w1, b1 = lin(ks[2], ks[3], EMBEDDING_DIM + H_DIM, MLP_HIDDEN)
    w2, b2 = lin(ks[4], ks[5], MLP_HIDDEN, BOTTLENECK_DIM)
    wattn, battn = lin(ks[6], ks[7], MAX_PEDS * BOTTLENECK_DIM, MAX_PEDS)
    return (wse, bse, w1, b1, w2, b2, wattn, battn)


if __name__ == "__main__":
    key = jax.random.PRNGKey(0)
    kh, kp, kparam = jax.random.split(key, 3)

    npeds = 8
    h_states = jax.random.normal(kh, (npeds, MAX_PEDS, H_DIM), jnp.float32)
    end_pos = jax.random.normal(kp, (npeds, MAX_PEDS, 2), jnp.float32) * 2.0
    params = init_params(kparam)

    out = jax.block_until_ready(social_attention(h_states, end_pos, params))
    ref = jax.block_until_ready(social_attention_reference(h_states, end_pos, params))

    assert out.shape == (npeds, BOTTLENECK_DIM), out.shape
    assert jnp.allclose(out, ref, rtol=2e-2, atol=2e-2), float(jnp.max(jnp.abs(out - ref)))
    print("KERNEL_OK")
</pallas_src>

<mosaic_0001>
module attributes {stable_mosaic.version = 11 : i64} {
  func.func @social_attention_kernel(%arg0: i32, %arg1: memref<16x8x32xf32, #tpu.memory_space<vmem>>, %arg2: memref<16x8x2xf32, #tpu.memory_space<vmem>>, %arg3: memref<32x512xbf16, #tpu.memory_space<vmem>>, %arg4: memref<2x512xf32, #tpu.memory_space<vmem>>, %arg5: memref<1x512xf32, #tpu.memory_space<vmem>>, %arg6: memref<512x32xbf16, #tpu.memory_space<vmem>>, %arg7: memref<1x32xf32, #tpu.memory_space<vmem>>, %arg8: memref<8x32x8xf32, #tpu.memory_space<vmem>>, %arg9: memref<1x8xf32, #tpu.memory_space<vmem>>, %arg10: memref<16x32xf32, #tpu.memory_space<vmem>>) attributes {dimension_semantics = [#tpu.dimension_semantics<parallel>], iteration_bounds = array<i64: 1>, scalar_prefetch = 0 : i64, scratch_operands = 0 : i64, tpu.core_type = #tpu.core_type<tc>, window_params = [{transform_indices = @transform_0, window_bounds = array<i64: 16, 8, 32>}, {transform_indices = @transform_1, window_bounds = array<i64: 16, 8, 2>}, {pipeline_mode = #tpu.pipeline_mode<synchronous>, transform_indices = @transform_2, window_bounds = array<i64: 32, 512>}, {pipeline_mode = #tpu.pipeline_mode<synchronous>, transform_indices = @transform_3, window_bounds = array<i64: 2, 512>}, {pipeline_mode = #tpu.pipeline_mode<synchronous>, transform_indices = @transform_4, window_bounds = array<i64: 1, 512>}, {pipeline_mode = #tpu.pipeline_mode<synchronous>, transform_indices = @transform_5, window_bounds = array<i64: 512, 32>}, {pipeline_mode = #tpu.pipeline_mode<synchronous>, transform_indices = @transform_6, window_bounds = array<i64: 1, 32>}, {pipeline_mode = #tpu.pipeline_mode<synchronous>, transform_indices = @transform_7, window_bounds = array<i64: 8, 32, 8>}, {pipeline_mode = #tpu.pipeline_mode<synchronous>, transform_indices = @transform_8, window_bounds = array<i64: 1, 8>}, {transform_indices = @transform_9, window_bounds = array<i64: 16, 32>}]} {
    %c0 = arith.constant 0 : index
    %c0_0 = arith.constant 0 : index
    %c0_1 = arith.constant 0 : index
    %0 = vector.load %arg1[%c0, %c0_0, %c0_1] : memref<16x8x32xf32, #tpu.memory_space<vmem>>, vector<16x8x32xf32>
    %1 = vector.shape_cast %0 : vector<16x8x32xf32> to vector<128x32xf32>
    %c0_2 = arith.constant 0 : index
    %c0_3 = arith.constant 0 : index
    %c0_4 = arith.constant 0 : index
    %2 = vector.load %arg2[%c0_2, %c0_3, %c0_4] : memref<16x8x2xf32, #tpu.memory_space<vmem>>, vector<16x8x2xf32>
    %3 = vector.shape_cast %2 : vector<16x8x2xf32> to vector<128x2xf32>
    %4 = arith.truncf %1 : vector<128x32xf32> to vector<128x32xbf16>
    %c0_5 = arith.constant 0 : index
    %c0_6 = arith.constant 0 : index
    %5 = vector.load %arg3[%c0_5, %c0_6] : memref<32x512xbf16, #tpu.memory_space<vmem>>, vector<32x512xbf16>
    %cst = arith.constant dense<0.000000e+00> : vector<128x512xf32>
    %6 = tpu.matmul %4, %5, %cst {dimension_numbers = #tpu.dot_dimension_numbers<[1], [0], [0], [1], [0, 0, 1, 1], [], []>} : vector<128x32xbf16>, vector<32x512xbf16>, vector<128x512xf32> -> vector<128x512xf32>
    %c0_7 = arith.constant 0 : index
    %c0_8 = arith.constant 0 : index
    %7 = vector.load %arg4[%c0_7, %c0_8] : memref<2x512xf32, #tpu.memory_space<vmem>>, vector<2x512xf32>
    %8 = vector.extract_strided_slice %3 {offsets = [0, 0], sizes = [128, 1], strides = [1, 1]} : vector<128x2xf32> to vector<128x1xf32>
    %9 = vector.extract_strided_slice %7 {offsets = [0, 0], sizes = [1, 512], strides = [1, 1]} : vector<2x512xf32> to vector<1x512xf32>
    %10 = vector.broadcast %8 : vector<128x1xf32> to vector<128x512xf32>
    %11 = vector.broadcast %9 : vector<1x512xf32> to vector<128x512xf32>
    %12 = arith.mulf %10, %11 : vector<128x512xf32>
    %13 = arith.addf %6, %12 : vector<128x512xf32>
    %14 = vector.extract_strided_slice %3 {offsets = [0, 1], sizes = [128, 1], strides = [1, 1]} : vector<128x2xf32> to vector<128x1xf32>
    %15 = vector.extract_strided_slice %7 {offsets = [1, 0], sizes = [1, 512], strides = [1, 1]} : vector<2x512xf32> to vector<1x512xf32>
    %16 = vector.broadcast %14 : vector<128x1xf32> to vector<128x512xf32>
    %17 = vector.broadcast %15 : vector<1x512xf32> to vector<128x512xf32>
    %18 = arith.mulf %16, %17 : vector<128x512xf32>
    %19 = arith.addf %13, %18 : vector<128x512xf32>
    %c0_9 = arith.constant 0 : index
    %c0_10 = arith.constant 0 : index
    %20 = vector.load %arg5[%c0_9, %c0_10] : memref<1x512xf32, #tpu.memory_space<vmem>>, vector<1x512xf32>
    %21 = vector.broadcast %20 : vector<1x512xf32> to vector<128x512xf32>
    %22 = arith.addf %19, %21 : vector<128x512xf32>
    %cst_11 = arith.constant 0.000000e+00 : f32
    %23 = vector.broadcast %cst_11 : f32 to vector<128x512xf32>
    %24 = arith.maximumf %22, %23 : vector<128x512xf32>
    %25 = arith.truncf %24 : vector<128x512xf32> to vector<128x512xbf16>
    %c0_12 = arith.constant 0 : index
    %c0_13 = arith.constant 0 : index
    %26 = vector.load %arg6[%c0_12, %c0_13] : memref<512x32xbf16, #tpu.memory_space<vmem>>, vector<512x32xbf16>
    %cst_14 = arith.constant dense<0.000000e+00> : vector<128x32xf32>
    %27 = tpu.matmul %25, %26, %cst_14 {dimension_numbers = #tpu.dot_dimension_numbers<[1], [0], [0], [1], [0, 0, 1, 1], [], []>} : vector<128x512xbf16>, vector<512x32xbf16>, vector<128x32xf32> -> vector<128x32xf32>
    %c0_15 = arith.constant 0 : index
    %c0_16 = arith.constant 0 : index
    %28 = vector.load %arg7[%c0_15, %c0_16] : memref<1x32xf32, #tpu.memory_space<vmem>>, vector<1x32xf32>
    %29 = vector.broadcast %28 : vector<1x32xf32> to vector<128x32xf32>
    %30 = arith.addf %27, %29 : vector<128x32xf32>
    %cst_17 = arith.constant 0.000000e+00 : f32
    %31 = vector.broadcast %cst_17 : f32 to vector<128x32xf32>
    %32 = arith.maximumf %30, %31 : vector<128x32xf32>
    %33 = vector.shape_cast %32 : vector<128x32xf32> to vector<16x8x32xf32>
    %34 = vector.extract_strided_slice %33 {offsets = [0, 0, 0], sizes = [16, 1, 32], strides = [1, 1, 1]} : vector<16x8x32xf32> to vector<16x1x32xf32>
    %35 = vector.shape_cast %34 : vector<16x1x32xf32> to vector<16x32xf32>
    %36 = vector.extract_strided_slice %33 {offsets = [0, 1, 0], sizes = [16, 1, 32], strides = [1, 1, 1]} : vector<16x8x32xf32> to vector<16x1x32xf32>
    %37 = vector.shape_cast %36 : vector<16x1x32xf32> to vector<16x32xf32>
    %38 = vector.extract_strided_slice %33 {offsets = [0, 2, 0], sizes = [16, 1, 32], strides = [1, 1, 1]} : vector<16x8x32xf32> to vector<16x1x32xf32>
    %39 = vector.shape_cast %38 : vector<16x1x32xf32> to vector<16x32xf32>
    %40 = vector.extract_strided_slice %33 {offsets = [0, 3, 0], sizes = [16, 1, 32], strides = [1, 1, 1]} : vector<16x8x32xf32> to vector<16x1x32xf32>
    %41 = vector.shape_cast %40 : vector<16x1x32xf32> to vector<16x32xf32>
    %42 = vector.extract_strided_slice %33 {offsets = [0, 4, 0], sizes = [16, 1, 32], strides = [1, 1, 1]} : vector<16x8x32xf32> to vector<16x1x32xf32>
    %43 = vector.shape_cast %42 : vector<16x1x32xf32> to vector<16x32xf32>
    %44 = vector.extract_strided_slice %33 {offsets = [0, 5, 0], sizes = [16, 1, 32], strides = [1, 1, 1]} : vector<16x8x32xf32> to vector<16x1x32xf32>
    %45 = vector.shape_cast %44 : vector<16x1x32xf32> to vector<16x32xf32>
    %46 = vector.extract_strided_slice %33 {offsets = [0, 6, 0], sizes = [16, 1, 32], strides = [1, 1, 1]} : vector<16x8x32xf32> to vector<16x1x32xf32>
    %47 = vector.shape_cast %46 : vector<16x1x32xf32> to vector<16x32xf32>
    %48 = vector.extract_strided_slice %33 {offsets = [0, 7, 0], sizes = [16, 1, 32], strides = [1, 1, 1]} : vector<16x8x32xf32> to vector<16x1x32xf32>
    %49 = vector.shape_cast %48 : vector<16x1x32xf32> to vector<16x32xf32>
    %cst_18 = arith.constant 0.000000e+00 : f32
    %50 = vector.broadcast %cst_18 : f32 to vector<16x8xf32>
    %c0_19 = arith.constant 0 : index
    %c0_20 = arith.constant 0 : index
    %c0_21 = arith.constant 0 : index
    %51 = vector.load %arg8[%c0_19, %c0_20, %c0_21] : memref<8x32x8xf32, #tpu.memory_space<vmem>>, vector<1x32x8xf32>
    %52 = vector.shape_cast %51 : vector<1x32x8xf32> to vector<32x8xf32>
    %cst_22 = arith.constant dense<0.000000e+00> : vector<16x8xf32>
    %53 = tpu.matmul %35, %52, %cst_22 {dimension_numbers = #tpu.dot_dimension_numbers<[1], [0], [0], [1], [0, 0, 1, 1], [], []>} : vector<16x32xf32>, vector<32x8xf32>, vector<16x8xf32> -> vector<16x8xf32>
    %54 = arith.addf %50, %53 : vector<16x8xf32>
    %c1 = arith.constant 1 : index
    %c0_23 = arith.constant 0 : index
    %c0_24 = arith.constant 0 : index
    %55 = vector.load %arg8[%c1, %c0_23, %c0_24] : memref<8x32x8xf32, #tpu.memory_space<vmem>>, vector<1x32x8xf32>
    %56 = vector.shape_cast %55 : vector<1x32x8xf32> to vector<32x8xf32>
    %cst_25 = arith.constant dense<0.000000e+00> : vector<16x8xf32>
    %57 = tpu.matmul %37, %56, %cst_25 {dimension_numbers = #tpu.dot_dimension_numbers<[1], [0], [0], [1], [0, 0, 1, 1], [], []>} : vector<16x32xf32>, vector<32x8xf32>, vector<16x8xf32> -> vector<16x8xf32>
    %58 = arith.addf %54, %57 : vector<16x8xf32>
    %c2 = arith.constant 2 : index
    %c0_26 = arith.constant 0 : index
    %c0_27 = arith.constant 0 : index
    %59 = vector.load %arg8[%c2, %c0_26, %c0_27] : memref<8x32x8xf32, #tpu.memory_space<vmem>>, vector<1x32x8xf32>
    %60 = vector.shape_cast %59 : vector<1x32x8xf32> to vector<32x8xf32>
    %cst_28 = arith.constant dense<0.000000e+00> : vector<16x8xf32>
    %61 = tpu.matmul %39, %60, %cst_28 {dimension_numbers = #tpu.dot_dimension_numbers<[1], [0], [0], [1], [0, 0, 1, 1], [], []>} : vector<16x32xf32>, vector<32x8xf32>, vector<16x8xf32> -> vector<16x8xf32>
    %62 = arith.addf %58, %61 : vector<16x8xf32>
    %c3 = arith.constant 3 : index
    %c0_29 = arith.constant 0 : index
    %c0_30 = arith.constant 0 : index
    %63 = vector.load %arg8[%c3, %c0_29, %c0_30] : memref<8x32x8xf32, #tpu.memory_space<vmem>>, vector<1x32x8xf32>
    %64 = vector.shape_cast %63 : vector<1x32x8xf32> to vector<32x8xf32>
    %cst_31 = arith.constant dense<0.000000e+00> : vector<16x8xf32>
    %65 = tpu.matmul %41, %64, %cst_31 {dimension_numbers = #tpu.dot_dimension_numbers<[1], [0], [0], [1], [0, 0, 1, 1], [], []>} : vector<16x32xf32>, vector<32x8xf32>, vector<16x8xf32> -> vector<16x8xf32>
    %66 = arith.addf %62, %65 : vector<16x8xf32>
    %c4 = arith.constant 4 : index
    %c0_32 = arith.constant 0 : index
    %c0_33 = arith.constant 0 : index
    %67 = vector.load %arg8[%c4, %c0_32, %c0_33] : memref<8x32x8xf32, #tpu.memory_space<vmem>>, vector<1x32x8xf32>
    %68 = vector.shape_cast %67 : vector<1x32x8xf32> to vector<32x8xf32>
    %cst_34 = arith.constant dense<0.000000e+00> : vector<16x8xf32>
    %69 = tpu.matmul %43, %68, %cst_34 {dimension_numbers = #tpu.dot_dimension_numbers<[1], [0], [0], [1], [0, 0, 1, 1], [], []>} : vector<16x32xf32>, vector<32x8xf32>, vector<16x8xf32> -> vector<16x8xf32>
    %70 = arith.addf %66, %69 : vector<16x8xf32>
    %c5 = arith.constant 5 : index
    %c0_35 = arith.constant 0 : index
    %c0_36 = arith.constant 0 : index
    %71 = vector.load %arg8[%c5, %c0_35, %c0_36] : memref<8x32x8xf32, #tpu.memory_space<vmem>>, vector<1x32x8xf32>
    %72 = vector.shape_cast %71 : vector<1x32x8xf32> to vector<32x8xf32>
    %cst_37 = arith.constant dense<0.000000e+00> : vector<16x8xf32>
    %73 = tpu.matmul %45, %72, %cst_37 {dimension_numbers = #tpu.dot_dimension_numbers<[1], [0], [0], [1], [0, 0, 1, 1], [], []>} : vector<16x32xf32>, vector<32x8xf32>, vector<16x8xf32> -> vector<16x8xf32>
    %74 = arith.addf %70, %73 : vector<16x8xf32>
    %c6 = arith.constant 6 : index
    %c0_38 = arith.constant 0 : index
    %c0_39 = arith.constant 0 : index
    %75 = vector.load %arg8[%c6, %c0_38, %c0_39] : memref<8x32x8xf32, #tpu.memory_space<vmem>>, vector<1x32x8xf32>
    %76 = vector.shape_cast %75 : vector<1x32x8xf32> to vector<32x8xf32>
    %cst_40 = arith.constant dense<0.000000e+00> : vector<16x8xf32>
    %77 = tpu.matmul %47, %76, %cst_40 {dimension_numbers = #tpu.dot_dimension_numbers<[1], [0], [0], [1], [0, 0, 1, 1], [], []>} : vector<16x32xf32>, vector<32x8xf32>, vector<16x8xf32> -> vector<16x8xf32>
    %78 = arith.addf %74, %77 : vector<16x8xf32>
    %c7 = arith.constant 7 : index
    %c0_41 = arith.constant 0 : index
    %c0_42 = arith.constant 0 : index
    %79 = vector.load %arg8[%c7, %c0_41, %c0_42] : memref<8x32x8xf32, #tpu.memory_space<vmem>>, vector<1x32x8xf32>
    %80 = vector.shape_cast %79 : vector<1x32x8xf32> to vector<32x8xf32>
    %cst_43 = arith.constant dense<0.000000e+00> : vector<16x8xf32>
    %81 = tpu.matmul %49, %80, %cst_43 {dimension_numbers = #tpu.dot_dimension_numbers<[1], [0], [0], [1], [0, 0, 1, 1], [], []>} : vector<16x32xf32>, vector<32x8xf32>, vector<16x8xf32> -> vector<16x8xf32>
    %82 = arith.addf %78, %81 : vector<16x8xf32>
    %c0_44 = arith.constant 0 : index
    %c0_45 = arith.constant 0 : index
    %83 = vector.load %arg9[%c0_44, %c0_45] : memref<1x8xf32, #tpu.memory_space<vmem>>, vector<1x8xf32>
    %84 = vector.broadcast %83 : vector<1x8xf32> to vector<16x8xf32>
    %85 = arith.addf %82, %84 : vector<16x8xf32>
    %cst_46 = arith.constant dense<0xFF800000> : vector<16xf32>
    %86 = vector.multi_reduction <maximumf>, %85, %cst_46 [1] : vector<16x8xf32> to vector<16xf32>
    %87 = vector.shape_cast %86 : vector<16xf32> to vector<16x1xf32>
    %88 = vector.broadcast %87 : vector<16x1xf32> to vector<16x8xf32>
    %89 = arith.subf %85, %88 : vector<16x8xf32>
    %90 = math.exp %89 : vector<16x8xf32>
    %cst_47 = arith.constant dense<0.000000e+00> : vector<16xf32>
    %91 = vector.multi_reduction <add>, %90, %cst_47 [1] : vector<16x8xf32> to vector<16xf32>
    %92 = vector.shape_cast %91 : vector<16xf32> to vector<16x1xf32>
    %93 = tpu.reciprocal %92 {approx = true} : vector<16x1xf32> -> vector<16x1xf32>
    %94 = vector.broadcast %93 : vector<16x1xf32> to vector<16x8xf32>
    %95 = arith.mulf %90, %94 : vector<16x8xf32>
    %cst_48 = arith.constant 0.000000e+00 : f32
    %96 = vector.broadcast %cst_48 : f32 to vector<16x32xf32>
    %97 = vector.extract_strided_slice %95 {offsets = [0, 0], sizes = [16, 1], strides = [1, 1]} : vector<16x8xf32> to vector<16x1xf32>
    %98 = vector.broadcast %97 : vector<16x1xf32> to vector<16x32xf32>
    %99 = arith.mulf %35, %98 : vector<16x32xf32>
    %100 = arith.addf %96, %99 : vector<16x32xf32>
    %101 = vector.extract_strided_slice %95 {offsets = [0, 1], sizes = [16, 1], strides = [1, 1]} : vector<16x8xf32> to vector<16x1xf32>
    %102 = vector.broadcast %101 : vector<16x1xf32> to vector<16x32xf32>
    %103 = arith.mulf %37, %102 : vector<16x32xf32>
    %104 = arith.addf %100, %103 : vector<16x32xf32>
    %105 = vector.extract_strided_slice %95 {offsets = [0, 2], sizes = [16, 1], strides = [1, 1]} : vector<16x8xf32> to vector<16x1xf32>
    %106 = vector.broadcast %105 : vector<16x1xf32> to vector<16x32xf32>
    %107 = arith.mulf %39, %106 : vector<16x32xf32>
    %108 = arith.addf %104, %107 : vector<16x32xf32>
    %109 = vector.extract_strided_slice %95 {offsets = [0, 3], sizes = [16, 1], strides = [1, 1]} : vector<16x8xf32> to vector<16x1xf32>
    %110 = vector.broadcast %109 : vector<16x1xf32> to vector<16x32xf32>
    %111 = arith.mulf %41, %110 : vector<16x32xf32>
    %112 = arith.addf %108, %111 : vector<16x32xf32>
    %113 = vector.extract_strided_slice %95 {offsets = [0, 4], sizes = [16, 1], strides = [1, 1]} : vector<16x8xf32> to vector<16x1xf32>
    %114 = vector.broadcast %113 : vector<16x1xf32> to vector<16x32xf32>
    %115 = arith.mulf %43, %114 : vector<16x32xf32>
    %116 = arith.addf %112, %115 : vector<16x32xf32>
    %117 = vector.extract_strided_slice %95 {offsets = [0, 5], sizes = [16, 1], strides = [1, 1]} : vector<16x8xf32> to vector<16x1xf32>
    %118 = vector.broadcast %117 : vector<16x1xf32> to vector<16x32xf32>
    %119 = arith.mulf %45, %118 : vector<16x32xf32>
    %120 = arith.addf %116, %119 : vector<16x32xf32>
    %121 = vector.extract_strided_slice %95 {offsets = [0, 6], sizes = [16, 1], strides = [1, 1]} : vector<16x8xf32> to vector<16x1xf32>
    %122 = vector.broadcast %121 : vector<16x1xf32> to vector<16x32xf32>
    %123 = arith.mulf %47, %122 : vector<16x32xf32>
    %124 = arith.addf %120, %123 : vector<16x32xf32>
    %125 = vector.extract_strided_slice %95 {offsets = [0, 7], sizes = [16, 1], strides = [1, 1]} : vector<16x8xf32> to vector<16x1xf32>
    %126 = vector.broadcast %125 : vector<16x1xf32> to vector<16x32xf32>
    %127 = arith.mulf %49, %126 : vector<16x32xf32>
    %128 = arith.addf %124, %127 : vector<16x32xf32>
    %c0_49 = arith.constant 0 : index
    %c0_50 = arith.constant 0 : index
    %129 = vector.load %arg10[%c0_49, %c0_50] : memref<16x32xf32, #tpu.memory_space<vmem>>, vector<16x32xf32>
    tpu.vector_store %arg10[%c0_49, %c0_50], %128 {strides = array<i32>} : memref<16x32xf32, #tpu.memory_space<vmem>>, vector<16x32xf32>,
    return
  }
  func.func @transform_0(%arg0: i32) -> (i32, i32, i32) {
    %c0_i32 = arith.constant 0 : i32
    %c0_i32_0 = arith.constant 0 : i32
    %c0_i32_1 = arith.constant 0 : i32
    return %arg0, %c0_i32, %c0_i32_0 : i32, i32, i32
  }
  func.func @transform_1(%arg0: i32) -> (i32, i32, i32) {
    %c0_i32 = arith.constant 0 : i32
    %c0_i32_0 = arith.constant 0 : i32
    %c0_i32_1 = arith.constant 0 : i32
    return %arg0, %c0_i32, %c0_i32_0 : i32, i32, i32
  }
  func.func @transform_2(%arg0: i32) -> (i32, i32) {
    %c0_i32 = arith.constant 0 : i32
    %c0_i32_0 = arith.constant 0 : i32
    %c0_i32_1 = arith.constant 0 : i32
    return %c0_i32, %c0_i32_0 : i32, i32
  }
  func.func @transform_3(%arg0: i32) -> (i32, i32) {
    %c0_i32 = arith.constant 0 : i32
    %c0_i32_0 = arith.constant 0 : i32
    %c0_i32_1 = arith.constant 0 : i32
    return %c0_i32, %c0_i32_0 : i32, i32
  }
  func.func @transform_4(%arg0: i32) -> (i32, i32) {
    %c0_i32 = arith.constant 0 : i32
    %c0_i32_0 = arith.constant 0 : i32
    %c0_i32_1 = arith.constant 0 : i32
    return %c0_i32, %c0_i32_0 : i32, i32
  }
  func.func @transform_5(%arg0: i32) -> (i32, i32) {
    %c0_i32 = arith.constant 0 : i32
    %c0_i32_0 = arith.constant 0 : i32
    %c0_i32_1 = arith.constant 0 : i32
    return %c0_i32, %c0_i32_0 : i32, i32
  }
  func.func @transform_6(%arg0: i32) -> (i32, i32) {
    %c0_i32 = arith.constant 0 : i32
    %c0_i32_0 = arith.constant 0 : i32
    %c0_i32_1 = arith.constant 0 : i32
    return %c0_i32, %c0_i32_0 : i32, i32
  }
  func.func @transform_7(%arg0: i32) -> (i32, i32, i32) {
    %c0_i32 = arith.constant 0 : i32
    %c0_i32_0 = arith.constant 0 : i32
    %c0_i32_1 = arith.constant 0 : i32
    %c0_i32_2 = arith.constant 0 : i32
    return %c0_i32, %c0_i32_0, %c0_i32_1 : i32, i32, i32
  }
  func.func @transform_8(%arg0: i32) -> (i32, i32) {
    %c0_i32 = arith.constant 0 : i32
    %c0_i32_0 = arith.constant 0 : i32
    %c0_i32_1 = arith.constant 0 : i32
    return %c0_i32, %c0_i32_0 : i32, i32
  }
  func.func @transform_9(%arg0: i32) -> (i32, i32) {
    %c0_i32 = arith.constant 0 : i32
    %c0_i32_0 = arith.constant 0 : i32
    return %arg0, %c0_i32 : i32, i32
  }
}

</mosaic_0001>

<llo_original>
// kernel: tpu_custom_call.1
$region0: #{tpu_custom_call.1}
  #allocation0 [shape = 'u32[]', space=smem, size = 0x4, offset = 0x4, fixed_abs, tag = 'smem constant byte address 0x4 - core index']
  #allocation1 [shape = 'u32[144,128]{1,0:T(1,128)}', space=vmem, size = 0x12000, scoped, tag = 'internal scratch']
  %s0 = inlined_call_operand.vmem [shape: f32[16,8,32], index: 0, kind: input, shape index: {}]
  %s1 = inlined_call_operand.vmem [shape: f32[16,8,2], index: 1, kind: input, shape index: {}]
  %s2 = inlined_call_operand.vmem [shape: bf16[32,512], index: 2, kind: input, shape index: {}]
  %s3 = inlined_call_operand.vmem [shape: f32[2,512], index: 3, kind: input, shape index: {}]
  %s4 = inlined_call_operand.vmem [shape: f32[1,512], index: 4, kind: input, shape index: {}]
  %s5 = inlined_call_operand.vmem [shape: bf16[512,32], index: 5, kind: input, shape index: {}]
  %s6 = inlined_call_operand.vmem [shape: f32[1,32], index: 6, kind: input, shape index: {}]
  %s7 = inlined_call_operand.vmem [shape: f32[8,32,8], index: 7, kind: input, shape index: {}]
  %s8 = inlined_call_operand.vmem [shape: f32[1,8], index: 8, kind: input, shape index: {}]
  %s9 = inlined_call_operand.hbm [shape: f32[16,32], index: 9, kind: output, shape index: {}]
  %s10 = sld [smem:[#allocation0]]
  $region46: #{tpu_custom_call.1} parent=0
    _
  %s12 = ssub.s32 1, %s10
  %s13 = scalar_select 0, %s12, %s10
  $region1: #{tpu_custom_call.1} parent=0
    #allocation2 [shape = 'u8[8192]{0}', space=vmem, size = 0x2000, scoped, tag = 'output window, operand 0, single buffered']
    #allocation3 [shape = 's32[1]{0}', space=sflag, size = 0x4, scoped, tag = 'scoped memory for tpu_custom_call.1']
    %14 = vsyncpa [#allocation3], 0
    // Predicated region
    $region2: #{tpu_custom_call.1} parent=1 // pred_check
      _
    $region3: #{tpu_custom_call.1} parent=1 // pred_check_branch
      %16 = sbr.rel (0) target = $region5
    $region4: #{tpu_custom_call.1} parent=1 // pred_region
      _
    $region5: #{tpu_custom_call.1} parent=1 // pred_fallthru
      _
    // Predicated region
    $region6: #{tpu_custom_call.1} parent=1 // pred_check
      _
    $region7: #{tpu_custom_call.1} parent=1 // pred_check_branch
      %18 = sbr.rel (0) target = $region9
    $region8: #{tpu_custom_call.1} parent=1 // pred_region
      _
    $region9: #{tpu_custom_call.1} parent=1 // pred_fallthru
      _
    // Predicated region
    $region10: #{tpu_custom_call.1} parent=1 // pred_check
      _
    $region11: #{tpu_custom_call.1} parent=1 // pred_check_branch
      %20 = sbr.rel (0) target = $region13
    $region12: #{tpu_custom_call.1} parent=1 // pred_region
      _
    $region13: #{tpu_custom_call.1} parent=1 // pred_fallthru
      _
    // Predicated region
    $region14: #{tpu_custom_call.1} parent=1 // pred_check
      _
    $region15: #{tpu_custom_call.1} parent=1 // pred_check_branch
      %22 = sbr.rel (0) target = $region17
    $region16: #{tpu_custom_call.1} parent=1 // pred_region
      _
    $region17: #{tpu_custom_call.1} parent=1 // pred_fallthru
      _
    // Predicated region
    $region18: #{tpu_custom_call.1} parent=1 // pred_check
      _
    $region19: #{tpu_custom_call.1} parent=1 // pred_check_branch
      %24 = sbr.rel (0) target = $region21
    $region20: #{tpu_custom_call.1} parent=1 // pred_region
      _
    $region21: #{tpu_custom_call.1} parent=1 // pred_fallthru
      _
    // Predicated region
    $region22: #{tpu_custom_call.1} parent=1 // pred_check
      _
    $region23: #{tpu_custom_call.1} parent=1 // pred_check_branch
      %26 = sbr.rel (0) target = $region25
    $region24: #{tpu_custom_call.1} parent=1 // pred_region
      _
    $region25: #{tpu_custom_call.1} parent=1 // pred_fallthru
      _
    // Predicated region
    $region26: #{tpu_custom_call.1} parent=1 // pred_check
      _
    $region27: #{tpu_custom_call.1} parent=1 // pred_check_branch
      %28 = sbr.rel (0) target = $region29
    $region28: #{tpu_custom_call.1} parent=1 // pred_region
      _
    $region29: #{tpu_custom_call.1} parent=1 // pred_fallthru
      _
    // Predicated region
    $region30: #{tpu_custom_call.1} parent=1 // pred_check
      _
    $region31: #{tpu_custom_call.1} parent=1 // pred_check_branch
      %30 = sbr.rel (0) target = $region33
    $region32: #{tpu_custom_call.1} parent=1 // pred_region
      _
    $region33: #{tpu_custom_call.1} parent=1 // pred_fallthru
      _
    // Predicated region
    $region34: #{tpu_custom_call.1} parent=1 // pred_check
      _
    $region35: #{tpu_custom_call.1} parent=1 // pred_check_branch
      %32 = sbr.rel (0) target = $region37
    $region36: #{tpu_custom_call.1} parent=1 // pred_region
      _
    $region37: #{tpu_custom_call.1} parent=1 // pred_fallthru
      _
    %v34 = vld [vmem:[%s0] sm:$0xff]
    %v35 = vld [vmem:[%s0 + $0x8] sm:$0xff]
    %v36 = vld [vmem:[%s0 + $0x10] sm:$0xff]
    %v37 = vld [vmem:[%s0 + $0x18] sm:$0xff]
    %v38 = vld [vmem:[%s0 + $0x20] sm:$0xff]
    %v39 = vld [vmem:[%s0 + $0x28] sm:$0xff]
    %v40 = vld [vmem:[%s0 + $0x30] sm:$0xff]
    %v41 = vld [vmem:[%s0 + $0x38] sm:$0xff]
    %v42 = vld [vmem:[%s0 + $0x40] sm:$0xff]
    %v43 = vld [vmem:[%s0 + $0x48] sm:$0xff]
    %v44 = vld [vmem:[%s0 + $0x50] sm:$0xff]
    %v45 = vld [vmem:[%s0 + $0x58] sm:$0xff]
    %v46 = vld [vmem:[%s0 + $0x60] sm:$0xff]
    %v47 = vld [vmem:[%s0 + $0x68] sm:$0xff]
    %v48 = vld [vmem:[%s0 + $0x70] sm:$0xff]
    %v49 = vld [vmem:[%s0 + $0x78] sm:$0xff]
    %v50 = vld [vmem:[%s1] sm:$0xff]
    %v51 = vld [vmem:[%s1 + $0x8] sm:$0xff]
    %v52 = vld [vmem:[%s1 + $0x10] sm:$0xff]
    %v53 = vld [vmem:[%s1 + $0x18] sm:$0xff]
    %v54 = vld [vmem:[%s1 + $0x20] sm:$0xff]
    %v55 = vld [vmem:[%s1 + $0x28] sm:$0xff]
    %v56 = vld [vmem:[%s1 + $0x30] sm:$0xff]
    %v57 = vld [vmem:[%s1 + $0x38] sm:$0xff]
    %v58 = vld [vmem:[%s1 + $0x40] sm:$0xff]
    %v59 = vld [vmem:[%s1 + $0x48] sm:$0xff]
    %v60 = vld [vmem:[%s1 + $0x50] sm:$0xff]
    %v61 = vld [vmem:[%s1 + $0x58] sm:$0xff]
    %v62 = vld [vmem:[%s1 + $0x60] sm:$0xff]
    %v63 = vld [vmem:[%s1 + $0x68] sm:$0xff]
    %v64 = vld [vmem:[%s1 + $0x70] sm:$0xff]
    %v65 = vld [vmem:[%s1 + $0x78] sm:$0xff]
    %v66 = vpack.c.bf16 %v35, %v34
    %v67 = vpack.c.bf16 %v37, %v36
    %v68 = vpack.c.bf16 %v39, %v38
    %v69 = vpack.c.bf16 %v41, %v40
    %v70 = vpack.c.bf16 %v43, %v42
    %v71 = vpack.c.bf16 %v45, %v44
    %v72 = vpack.c.bf16 %v47, %v46
    %v73 = vpack.c.bf16 %v49, %v48
    %v74 = vld [vmem:[%s2] sm:$0xff]
    %v75 = vld [vmem:[%s2 + $0x8] sm:$0xff]
    %v76 = vld [vmem:[%s2 + $0x10] sm:$0xff]
    %v77 = vld [vmem:[%s2 + $0x18] sm:$0xff]
    %v78 = vld [vmem:[%s2 + $0x20] sm:$0xff]
    %v79 = vld [vmem:[%s2 + $0x28] sm:$0xff]
    %v80 = vld [vmem:[%s2 + $0x30] sm:$0xff]
    %v81 = vld [vmem:[%s2 + $0x38] sm:$0xff]
    %v82 = vld [vmem:[%s3] sm:$0xff]
    %84 = vset.pattern.permute.xlu0 0
    %85 = vperm.xlu0 %84, %v50
    %v86 = vpop.permute.xlu0 %85
    %89 = vset.pattern.permute.xlu0 0
    %90 = vperm.xlu0 %89, %v51
    %v91 = vpop.permute.xlu0 %90
    %94 = vset.pattern.permute.xlu0 0
    %95 = vperm.xlu0 %94, %v52
    %v96 = vpop.permute.xlu0 %95
    %99 = vset.pattern.permute.xlu0 0
    %100 = vperm.xlu0 %99, %v53
    %v101 = vpop.permute.xlu0 %100
    %104 = vset.pattern.permute.xlu0 0
    %105 = vperm.xlu0 %104, %v54
    %v106 = vpop.permute.xlu0 %105
    %109 = vset.pattern.permute.xlu0 0
    %110 = vperm.xlu0 %109, %v55
    %v111 = vpop.permute.xlu0 %110
    %114 = vset.pattern.permute.xlu0 0
    %115 = vperm.xlu0 %114, %v56
    %v116 = vpop.permute.xlu0 %115
    %119 = vset.pattern.permute.xlu0 0
    %120 = vperm.xlu0 %119, %v57
    %v121 = vpop.permute.xlu0 %120
    %124 = vset.pattern.permute.xlu0 0
    %125 = vperm.xlu0 %124, %v58
    %v126 = vpop.permute.xlu0 %125
    %129 = vset.pattern.permute.xlu0 0
    %130 = vperm.xlu0 %129, %v59
    %v131 = vpop.permute.xlu0 %130
    %134 = vset.pattern.permute.xlu0 0
    %135 = vperm.xlu0 %134, %v60
    %v136 = vpop.permute.xlu0 %135
    %139 = vset.pattern.permute.xlu0 0
    %140 = vperm.xlu0 %139, %v61
    %v141 = vpop.permute.xlu0 %140
    %144 = vset.pattern.permute.xlu0 0
    %145 = vperm.xlu0 %144, %v62
    %v146 = vpop.permute.xlu0 %145
    %149 = vset.pattern.permute.xlu0 0
    %150 = vperm.xlu0 %149, %v63
    %v151 = vpop.permute.xlu0 %150
    %154 = vset.pattern.permute.xlu0 0
    %155 = vperm.xlu0 %154, %v64
    %v156 = vpop.permute.xlu0 %155
    %159 = vset.pattern.permute.xlu0 0
    %160 = vperm.xlu0 %159, %v65
    %v161 = vpop.permute.xlu0 %160
    %v164 = vlaneseq
    %v165 = vshrl.u32 %v164, 7
    %v166 = vsub.s32 0, %v165
    %v167 = vrot.slane %v82, %v166
    %v168 = vlaneseq
    %v169 = vshrl.u32 %v168, 7
    %v170 = vsub.s32 2, %v169
    %v171 = vrot.slane %v82, %v170
    %v172 = vlaneseq
    %v173 = vshrl.u32 %v172, 7
    %v174 = vsub.s32 4, %v173
    %v175 = vrot.slane %v82, %v174
    %v176 = vlaneseq
    %v177 = vshrl.u32 %v176, 7
    %v178 = vsub.s32 6, %v177
    %v179 = vrot.slane %v82, %v178
    %v184 = vlaneseq
    %v185 = vshrl.u32 %v184, 7
    %v186 = vsub.s32 0, %v185
    %v187 = vrot.slane %v167, %v186
    %v188 = vlaneseq
    %v189 = vshrl.u32 %v188, 7
    %v190 = vsub.s32 0, %v189
    %v191 = vrot.slane %v171, %v190
    %v192 = vlaneseq
    %v193 = vshrl.u32 %v192, 7
    %v194 = vsub.s32 0, %v193
    %v195 = vrot.slane %v175, %v194
    %v196 = vlaneseq
    %v197 = vshrl.u32 %v196, 7
    %v198 = vsub.s32 0, %v197
    %v199 = vrot.slane %v179, %v198
    %v200 = vmul.f32 %v86, %v187
    %v201 = vmul.f32 %v86, %v191
    %v202 = vmul.f32 %v86, %v195
    %v203 = vmul.f32 %v86, %v199
    %v204 = vmul.f32 %v91, %v187
    %v205 = vmul.f32 %v91, %v191
    %v206 = vmul.f32 %v91, %v195
    %v207 = vmul.f32 %v91, %v199
    %v208 = vmul.f32 %v96, %v187
    %v209 = vmul.f32 %v96, %v191
    %v210 = vmul.f32 %v96, %v195
    %v211 = vmul.f32 %v96, %v199
    %v212 = vmul.f32 %v101, %v187
    %v213 = vmul.f32 %v101, %v191
    %v214 = vmul.f32 %v101, %v195
    %v215 = vmul.f32 %v101, %v199
    %v216 = vmul.f32 %v106, %v187
    %v217 = vmul.f32 %v106, %v191
    %v218 = vmul.f32 %v106, %v195
    %v219 = vmul.f32 %v106, %v199
    %v220 = vmul.f32 %v111, %v187
    %v221 = vmul.f32 %v111, %v191
    %v222 = vmul.f32 %v111, %v195
    %v223 = vmul.f32 %v111, %v199
    %v224 = vmul.f32 %v116, %v187
    %v225 = vmul.f32 %v116, %v191
    %v226 = vmul.f32 %v116, %v195
    %v227 = vmul.f32 %v116, %v199
    %v228 = vmul.f32 %v121, %v187
    %v229 = vmul.f32 %v121, %v191
    %v230 = vmul.f32 %v121, %v195
    %v231 = vmul.f32 %v121, %v199
    %v232 = vmul.f32 %v126, %v187
    %v233 = vmul.f32 %v126, %v191
    %v234 = vmul.f32 %v126, %v195
    %v235 = vmul.f32 %v126, %v199
    %v236 = vmul.f32 %v131, %v187
    %v237 = vmul.f32 %v131, %v191
    %v238 = vmul.f32 %v131, %v195
    %v239 = vmul.f32 %v131, %v199
    %v240 = vmul.f32 %v136, %v187
    %v241 = vmul.f32 %v136, %v191
    %v242 = vmul.f32 %v136, %v195
    %v243 = vmul.f32 %v136, %v199
    %v244 = vmul.f32 %v141, %v187
    %v245 = vmul.f32 %v141, %v191
    %v246 = vmul.f32 %v141, %v195
    %v247 = vmul.f32 %v141, %v199
    %v248 = vmul.f32 %v146, %v187
    %v249 = vmul.f32 %v146, %v191
    %v250 = vmul.f32 %v146, %v195
    %v251 = vmul.f32 %v146, %v199
    %v252 = vmul.f32 %v151, %v187
    %v253 = vmul.f32 %v151, %v191
    %v254 = vmul.f32 %v151, %v195
    %v255 = vmul.f32 %v151, %v199
    %v256 = vmul.f32 %v156, %v187
    %v257 = vmul.f32 %v156, %v191
    %v258 = vmul.f32 %v156, %v195
    %v259 = vmul.f32 %v156, %v199
    %v260 = vmul.f32 %v161, %v187
    %v261 = vmul.f32 %v161, %v191
    %v262 = vmul.f32 %v161, %v195
    %v263 = vmul.f32 %v161, %v199
    %v272 = vunpack.c.l.b16 %v74
    %v273 = vunpack.c.h.b16 %v74
    %v274 = vunpack.c.l.b16 %v75
    %v275 = vunpack.c.h.b16 %v75
    %v276 = vunpack.c.l.b16 %v76
    %v277 = vunpack.c.h.b16 %v76
    %v278 = vunpack.c.l.b16 %v77
    %v279 = vunpack.c.h.b16 %v77
    %v280 = vunpack.c.l.b16 %v78
    %v281 = vunpack.c.h.b16 %v78
    %v282 = vunpack.c.l.b16 %v79
    %v283 = vunpack.c.h.b16 %v79
    %v284 = vunpack.c.l.b16 %v80
    %v285 = vunpack.c.h.b16 %v80
    %v286 = vunpack.c.l.b16 %v81
    %v287 = vunpack.c.h.b16 %v81
    %v288 = vpack.c.b16 %v276, %v272
    %v289 = vpack.c.b16 %v277, %v273
    %v290 = vpack.c.b16 %v278, %v274
    %v291 = vpack.c.b16 %v279, %v275
    %v292 = vpack.c.b16 %v284, %v280
    %v293 = vpack.c.b16 %v285, %v281
    %v294 = vpack.c.b16 %v286, %v282
    %v295 = vpack.c.b16 %v287, %v283
    %vm304 = vcmask 261120
    %v306 = vsel %vm304, %v66, 0
    %v309 = vsel %vm304, %v67, 0
    %v312 = vsel %vm304, %v68, 0
    %v315 = vsel %vm304, %v69, 0
    %v318 = vsel %vm304, %v70, 0
    %v321 = vsel %vm304, %v71, 0
    %v324 = vsel %vm304, %v72, 0
    %v327 = vsel %vm304, %v73, 0
    %329 = vmatprep.subr.bf16.mxu0 %v289
    %330 = vmatpush1.bf16.msra.mxu0 %v288
    %331 = vmatprep.subr.bf16.mxu0 %v293
    %332 = vmatpush1.bf16.msra.mxu0 %v292
    %333 = vmatprep.subr.bf16.mxu0 0
    %334 = vmatpush1.bf16.msra.mxu0 0
    %335 = vmatprep.subr.bf16.mxu0 0
    %336 = vmatpush1.bf16.msra.mxu0 0
    %337 = vmatprep.subr.bf16.mxu0 0
    %338 = vmatpush1.bf16.msra.mxu0 0
    %339 = vmatprep.subr.bf16.mxu0 0
    %340 = vmatpush1.bf16.msra.mxu0 0
    %341 = vmatprep.subr.bf16.mxu0 0
    %342 = vmatpush1.bf16.msra.mxu0 0
    %343 = vmatprep.subr.bf16.mxu0 0
    %344 = vmatpush1.bf16.msra.mxu0 0
    %345 = vmatprep.subr.bf16.mxu0 0
    %346 = vmatpush1.bf16.msra.mxu0 0
    %347 = vmatprep.subr.bf16.mxu0 0
    %348 = vmatpush1.bf16.msra.mxu0 0
    %349 = vmatprep.subr.bf16.mxu0 0
    %350 = vmatpush1.bf16.msra.mxu0 0
    %351 = vmatprep.subr.bf16.mxu0 0
    %352 = vmatpush1.bf16.msra.mxu0 0
    %353 = vmatprep.subr.bf16.mxu0 0
    %354 = vmatpush1.bf16.msra.mxu0 0
    %355 = vmatprep.subr.bf16.mxu0 0
    %356 = vmatpush1.bf16.msra.mxu0 0
    %357 = vmatprep.subr.bf16.mxu0 0
    %358 = vmatpush1.bf16.msra.mxu0 0
    %359 = vmatprep.subr.bf16.mxu0 0
    %360 = vmatpush1.bf16.msra.mxu0 0
    %361 = vmatprep.mubr.bf16.mxu0 0
    %362 = vmatmul.mubr.bf16.gmra.mrb[0].mxu0 %v306
    %v363 = vpop.f32.mrb[0].mxu0
    %v364 = vadd.f32 %v200, %v363
    %v365 = vpop.f32.mrb[0].mxu0
    %v366 = vadd.f32 %v201, %v365
    %v367 = vpop.f32.mrb[0].mxu0
    %v368 = vadd.f32 %v204, %v367
    %v369 = vpop.f32.mrb[0].mxu0
    %v370 = vadd.f32 %v205, %v369
    %371 = vmatprep.mubr.bf16.mxu0 0
    %372 = vmatmul.mubr.bf16.gmra.mrb[0].mxu0 %v309
    %v373 = vpop.f32.mrb[0].mxu0
    %v374 = vadd.f32 %v208, %v373
    %v375 = vpop.f32.mrb[0].mxu0
    %v376 = vadd.f32 %v209, %v375
    %v377 = vpop.f32.mrb[0].mxu0
    %v378 = vadd.f32 %v212, %v377
    %v379 = vpop.f32.mrb[0].mxu0
    %v380 = vadd.f32 %v213, %v379
    %381 = vmatprep.mubr.bf16.mxu0 0
    %382 = vmatmul.mubr.bf16.gmra.mrb[0].mxu0 %v312
    %v383 = vpop.f32.mrb[0].mxu0
    %v384 = vadd.f32 %v216, %v383
    %v385 = vpop.f32.mrb[0].mxu0
    %v386 = vadd.f32 %v217, %v385
    %v387 = vpop.f32.mrb[0].mxu0
    %v388 = vadd.f32 %v220, %v387
    %v389 = vpop.f32.mrb[0].mxu0
    %v390 = vadd.f32 %v221, %v389
    %391 = vmatprep.mubr.bf16.mxu0 0
    %392 = vmatmul.mubr.bf16.gmra.mrb[0].mxu0 %v315
    %v393 = vpop.f32.mrb[0].mxu0
    %v394 = vadd.f32 %v224, %v393
    %v395 = vpop.f32.mrb[0].mxu0
    %v396 = vadd.f32 %v225, %v395
    %v397 = vpop.f32.mrb[0].mxu0
    %v398 = vadd.f32 %v228, %v397
    %v399 = vpop.f32.mrb[0].mxu0
    %v400 = vadd.f32 %v229, %v399
    %401 = vmatprep.mubr.bf16.mxu0 0
    %402 = vmatmul.mubr.bf16.gmra.mrb[0].mxu0 %v318
    %v403 = vpop.f32.mrb[0].mxu0
    %v404 = vadd.f32 %v232, %v403
    %v405 = vpop.f32.mrb[0].mxu0
    %v406 = vadd.f32 %v233, %v405
    %v407 = vpop.f32.mrb[0].mxu0
    %v408 = vadd.f32 %v236, %v407
    %v409 = vpop.f32.mrb[0].mxu0
    %v410 = vadd.f32 %v237, %v409
    %411 = vmatprep.mubr.bf16.mxu0 0
    %412 = vmatmul.mubr.bf16.gmra.mrb[0].mxu0 %v321
    %v413 = vpop.f32.mrb[0].mxu0
    %v414 = vadd.f32 %v240, %v413
    %v415 = vpop.f32.mrb[0].mxu0
    %v416 = vadd.f32 %v241, %v415
    %v417 = vpop.f32.mrb[0].mxu0
    %v418 = vadd.f32 %v244, %v417
    %v419 = vpop.f32.mrb[0].mxu0
    %v420 = vadd.f32 %v245, %v419
    %421 = vmatprep.mubr.bf16.mxu0 0
    %422 = vmatmul.mubr.bf16.gmra.mrb[0].mxu0 %v324
    %v423 = vpop.f32.mrb[0].mxu0
    %v424 = vadd.f32 %v248, %v423
    %v425 = vpop.f32.mrb[0].mxu0
    %v426 = vadd.f32 %v249, %v425
    %v427 = vpop.f32.mrb[0].mxu0
    %v428 = vadd.f32 %v252, %v427
    %v429 = vpop.f32.mrb[0].mxu0
    %v430 = vadd.f32 %v253, %v429
    %431 = vmatprep.mubr.bf16.mxu0 0
    %432 = vmatmul.mubr.bf16.gmra.mrb[0].mxu0 %v327
    %v433 = vpop.f32.mrb[0].mxu0
    %v434 = vadd.f32 %v256, %v433
    %v435 = vpop.f32.mrb[0].mxu0
    %v436 = vadd.f32 %v257, %v435
    %v437 = vpop.f32.mrb[0].mxu0
    %v438 = vadd.f32 %v260, %v437
    %v439 = vpop.f32.mrb[0].mxu0
    %v440 = vadd.f32 %v261, %v439
    %441 = vdwg.mxu0
    %442 = vmatprep.subr.bf16.mxu0 %v291
    %443 = vmatpush1.bf16.msra.mxu0 %v290
    %444 = vmatprep.subr.bf16.mxu0 %v295
    %445 = vmatpush1.bf16.msra.mxu0 %v294
    %446 = vmatprep.subr.bf16.mxu0 0
    %447 = vmatpush1.bf16.msra.mxu0 0
    %448 = vmatprep.subr.bf16.mxu0 0
    %449 = vmatpush1.bf16.msra.mxu0 0
    %450 = vmatprep.subr.bf16.mxu0 0
    %451 = vmatpush1.bf16.msra.mxu0 0
    %452 = vmatprep.subr.bf16.mxu0 0
    %453 = vmatpush1.bf16.msra.mxu0 0
    %454 = vmatprep.subr.bf16.mxu0 0
    %455 = vmatpush1.bf16.msra.mxu0 0
    %456 = vmatprep.subr.bf16.mxu0 0
    %457 = vmatpush1.bf16.msra.mxu0 0
    %458 = vmatprep.subr.bf16.mxu0 0
    %459 = vmatpush1.bf16.msra.mxu0 0
    %460 = vmatprep.subr.bf16.mxu0 0
    %461 = vmatpush1.bf16.msra.mxu0 0
    %462 = vmatprep.subr.bf16.mxu0 0
    %463 = vmatpush1.bf16.msra.mxu0 0
    %464 = vmatprep.subr.bf16.mxu0 0
    %465 = vmatpush1.bf16.msra.mxu0 0
    %466 = vmatprep.subr.bf16.mxu0 0
    %467 = vmatpush1.bf16.msra.mxu0 0
    %468 = vmatprep.subr.bf16.mxu0 0
    %469 = vmatpush1.bf16.msra.mxu0 0
    %470 = vmatprep.subr.bf16.mxu0 0
    %471 = vmatpush1.bf16.msra.mxu0 0
    %472 = vmatprep.subr.bf16.mxu0 0
    %473 = vmatpush1.bf16.msra.mxu0 0
    %474 = vmatprep.mubr.bf16.mxu0 0
    %475 = vmatmul.mubr.bf16.gmra.mrb[0].mxu0 %v306
    %v476 = vpop.f32.mrb[0].mxu0
    %v477 = vadd.f32 %v202, %v476
    %v478 = vpop.f32.mrb[0].mxu0
    %v479 = vadd.f32 %v203, %v478
    %v480 = vpop.f32.mrb[0].mxu0
    %v481 = vadd.f32 %v206, %v480
    %v482 = vpop.f32.mrb[0].mxu0
    %v483 = vadd.f32 %v207, %v482
    %484 = vmatprep.mubr.bf16.mxu0 0
    %485 = vmatmul.mubr.bf16.gmra.mrb[0].mxu0 %v309
    %v486 = vpop.f32.mrb[0].mxu0
    %v487 = vadd.f32 %v210, %v486
    %v488 = vpop.f32.mrb[0].mxu0
    %v489 = vadd.f32 %v211, %v488
    %v490 = vpop.f32.mrb[0].mxu0
    %v491 = vadd.f32 %v214, %v490
    %v492 = vpop.f32.mrb[0].mxu0
    %v493 = vadd.f32 %v215, %v492
    %494 = vmatprep.mubr.bf16.mxu0 0
    %495 = vmatmul.mubr.bf16.gmra.mrb[0].mxu0 %v312
    %v496 = vpop.f32.mrb[0].mxu0
    %v497 = vadd.f32 %v218, %v496
    %v498 = vpop.f32.mrb[0].mxu0
    %v499 = vadd.f32 %v219, %v498
    %v500 = vpop.f32.mrb[0].mxu0
    %v501 = vadd.f32 %v222, %v500
    %v502 = vpop.f32.mrb[0].mxu0
    %v503 = vadd.f32 %v223, %v502
    %504 = vmatprep.mubr.bf16.mxu0 0
    %505 = vmatmul.mubr.bf16.gmra.mrb[0].mxu0 %v315
    %v506 = vpop.f32.mrb[0].mxu0
    %v507 = vadd.f32 %v226, %v506
    %v508 = vpop.f32.mrb[0].mxu0
    %v509 = vadd.f32 %v227, %v508
    %v510 = vpop.f32.mrb[0].mxu0
    %v511 = vadd.f32 %v230, %v510
    %v512 = vpop.f32.mrb[0].mxu0
    %v513 = vadd.f32 %v231, %v512
    %514 = vmatprep.mubr.bf16.mxu0 0
    %515 = vmatmul.mubr.bf16.gmra.mrb[0].mxu0 %v318
    %v516 = vpop.f32.mrb[0].mxu0
    %v517 = vadd.f32 %v234, %v516
    %v518 = vpop.f32.mrb[0].mxu0
    %v519 = vadd.f32 %v235, %v518
    %v520 = vpop.f32.mrb[0].mxu0
    %v521 = vadd.f32 %v238, %v520
    %v522 = vpop.f32.mrb[0].mxu0
    %v523 = vadd.f32 %v239, %v522
    %524 = vmatprep.mubr.bf16.mxu0 0
    %525 = vmatmul.mubr.bf16.gmra.mrb[0].mxu0 %v321
    %v526 = vpop.f32.mrb[0].mxu0
    %v527 = vadd.f32 %v242, %v526
    %v528 = vpop.f32.mrb[0].mxu0
    %v529 = vadd.f32 %v243, %v528
    %v530 = vpop.f32.mrb[0].mxu0
    %v531 = vadd.f32 %v246, %v530
    %v532 = vpop.f32.mrb[0].mxu0
    %v533 = vadd.f32 %v247, %v532
    %534 = vmatprep.mubr.bf16.mxu0 0
    %535 = vmatmul.mubr.bf16.gmra.mrb[0].mxu0 %v324
    %v536 = vpop.f32.mrb[0].mxu0
    %v537 = vadd.f32 %v250, %v536
    %v538 = vpop.f32.mrb[0].mxu0
    %v539 = vadd.f32 %v251, %v538
    %v540 = vpop.f32.mrb[0].mxu0
    %v541 = vadd.f32 %v254, %v540
    %v542 = vpop.f32.mrb[0].mxu0
    %v543 = vadd.f32 %v255, %v542
    %544 = vmatprep.mubr.bf16.mxu0 0
    %545 = vmatmul.mubr.bf16.gmra.mrb[0].mxu0 %v327
    %v546 = vpop.f32.mrb[0].mxu0
    %v547 = vadd.f32 %v258, %v546
    %v548 = vpop.f32.mrb[0].mxu0
    %v549 = vadd.f32 %v259, %v548
    %v550 = vpop.f32.mrb[0].mxu0
    %v551 = vadd.f32 %v262, %v550
    %v552 = vpop.f32.mrb[0].mxu0
    %v553 = vadd.f32 %v263, %v552
    %554 = vdwg.mxu0
    %555 = vset.pattern.permute.xlu0 1
    %556 = vperm.xlu0 %555, %v50
    %v557 = vpop.permute.xlu0 %556
    %559 = vset.pattern.permute.xlu0 1
    %560 = vperm.xlu0 %559, %v51
    %v561 = vpop.permute.xlu0 %560
    %563 = vset.pattern.permute.xlu0 1
    %564 = vperm.xlu0 %563, %v52
    %v565 = vpop.permute.xlu0 %564
    %567 = vset.pattern.permute.xlu0 1
    %568 = vperm.xlu0 %567, %v53
    %v569 = vpop.permute.xlu0 %568
    %571 = vset.pattern.permute.xlu0 1
    %572 = vperm.xlu0 %571, %v54
    %v573 = vpop.permute.xlu0 %572
    %575 = vset.pattern.permute.xlu0 1
    %576 = vperm.xlu0 %575, %v55
    %v577 = vpop.permute.xlu0 %576
    %579 = vset.pattern.permute.xlu0 1
    %580 = vperm.xlu0 %579, %v56
    %v581 = vpop.permute.xlu0 %580
    %583 = vset.pattern.permute.xlu0 1
    %584 = vperm.xlu0 %583, %v57
    %v585 = vpop.permute.xlu0 %584
    %587 = vset.pattern.permute.xlu0 1
    %588 = vperm.xlu0 %587, %v58
    %v589 = vpop.permute.xlu0 %588
    %591 = vset.pattern.permute.xlu0 1
    %592 = vperm.xlu0 %591, %v59
    %v593 = vpop.permute.xlu0 %592
    %595 = vset.pattern.permute.xlu0 1
    %596 = vperm.xlu0 %595, %v60
    %v597 = vpop.permute.xlu0 %596
    %599 = vset.pattern.permute.xlu0 1
    %600 = vperm.xlu0 %599, %v61
    %v601 = vpop.permute.xlu0 %600
    %603 = vset.pattern.permute.xlu0 1
    %604 = vperm.xlu0 %603, %v62
    %v605 = vpop.permute.xlu0 %604
    %607 = vset.pattern.permute.xlu0 1
    %608 = vperm.xlu0 %607, %v63
    %v609 = vpop.permute.xlu0 %608
    %611 = vset.pattern.permute.xlu0 1
    %612 = vperm.xlu0 %611, %v64
    %v613 = vpop.permute.xlu0 %612
    %615 = vset.pattern.permute.xlu0 1
    %616 = vperm.xlu0 %615, %v65
    %v617 = vpop.permute.xlu0 %616
    %v619 = vlaneseq
    %v620 = vshrl.u32 %v619, 7
    %v621 = vsub.s32 1, %v620
    %v622 = vrot.slane %v82, %v621
    %v623 = vlaneseq
    %v624 = vshrl.u32 %v623, 7
    %v625 = vsub.s32 3, %v624
    %v626 = vrot.slane %v82, %v625
    %v627 = vlaneseq
    %v628 = vshrl.u32 %v627, 7
    %v629 = vsub.s32 5, %v628
    %v630 = vrot.slane %v82, %v629
    %v631 = vlaneseq
    %v632 = vshrl.u32 %v631, 7
    %v633 = vsub.s32 7, %v632
    %v634 = vrot.slane %v82, %v633
    %v639 = vlaneseq
    %v640 = vshrl.u32 %v639, 7
    %v641 = vsub.s32 1, %v640
    %v642 = vrot.slane %v622, %v641
    %v643 = vlaneseq
    %v644 = vshrl.u32 %v643, 7
    %v645 = vsub.s32 1, %v644
    %v646 = vrot.slane %v626, %v645
    %v647 = vlaneseq
    %v648 = vshrl.u32 %v647, 7
    %v649 = vsub.s32 1, %v648
    %v650 = vrot.slane %v630, %v649
    %v651 = vlaneseq
    %v652 = vshrl.u32 %v651, 7
    %v653 = vsub.s32 1, %v652
    %v654 = vrot.slane %v634, %v653
    %v655 = vmul.f32 %v557, %v642
    %v656 = vmul.f32 %v557, %v646
    %v657 = vmul.f32 %v557, %v650
    %v658 = vmul.f32 %v557, %v654
    %v659 = vmul.f32 %v561, %v642
    %v660 = vmul.f32 %v561, %v646
    %v661 = vmul.f32 %v561, %v650
    %v662 = vmul.f32 %v561, %v654
    %v663 = vmul.f32 %v565, %v642
    %v664 = vmul.f32 %v565, %v646
    %v665 = vmul.f32 %v565, %v650
    %v666 = vmul.f32 %v565, %v654
    %v667 = vmul.f32 %v569, %v642
    %v668 = vmul.f32 %v569, %v646
    %v669 = vmul.f32 %v569, %v650
    %v670 = vmul.f32 %v569, %v654
    %v671 = vmul.f32 %v573, %v642
    %v672 = vmul.f32 %v573, %v646
    %v673 = vmul.f32 %v573, %v650
    %v674 = vmul.f32 %v573, %v654
    %v675 = vmul.f32 %v577, %v642
    %v676 = vmul.f32 %v577, %v646
    %v677 = vmul.f32 %v577, %v650
    %v678 = vmul.f32 %v577, %v654
    %v679 = vmul.f32 %v581, %v642
    %v680 = vmul.f32 %v581, %v646
    %v681 = vmul.f32 %v581, %v650
    %v682 = vmul.f32 %v581, %v654
    %v683 = vmul.f32 %v585, %v642
    %v684 = vmul.f32 %v585, %v646
    %v685 = vmul.f32 %v585, %v650
    %v686 = vmul.f32 %v585, %v654
    %v687 = vmul.f32 %v589, %v642
    %v688 = vmul.f32 %v589, %v646
    %v689 = vmul.f32 %v589, %v650
    %v690 = vmul.f32 %v589, %v654
    %v691 = vmul.f32 %v593, %v642
    %v692 = vmul.f32 %v593, %v646
    %v693 = vmul.f32 %v593, %v650
    %v694 = vmul.f32 %v593, %v654
    %v695 = vmul.f32 %v597, %v642
    %v696 = vmul.f32 %v597, %v646
    %v697 = vmul.f32 %v597, %v650
    %v698 = vmul.f32 %v597, %v654
    %v699 = vmul.f32 %v601, %v642
    %v700 = vmul.f32 %v601, %v646
    %v701 = vmul.f32 %v601, %v650
    %v702 = vmul.f32 %v601, %v654
    %v703 = vmul.f32 %v605, %v642
    %v704 = vmul.f32 %v605, %v646
    %v705 = vmul.f32 %v605, %v650
    %v706 = vmul.f32 %v605, %v654
    %v707 = vmul.f32 %v609, %v642
    %v708 = vmul.f32 %v609, %v646
    %v709 = vmul.f32 %v609, %v650
    %v710 = vmul.f32 %v609, %v654
    %v711 = vmul.f32 %v613, %v642
    %v712 = vmul.f32 %v613, %v646
    %v713 = vmul.f32 %v613, %v650
    %v714 = vmul.f32 %v613, %v654
    %v715 = vmul.f32 %v617, %v642
    %v716 = vmul.f32 %v617, %v646
    %v717 = vmul.f32 %v617, %v650
    %v718 = vmul.f32 %v617, %v654
    %v719 = vadd.f32 %v364, %v655
    %v720 = vadd.f32 %v366, %v656
    %v721 = vadd.f32 %v477, %v657
    %v722 = vadd.f32 %v479, %v658
    %v723 = vadd.f32 %v368, %v659
    %v724 = vadd.f32 %v370, %v660
    %v725 = vadd.f32 %v481, %v661
    %v726 = vadd.f32 %v483, %v662
    %v727 = vadd.f32 %v374, %v663
    %v728 = vadd.f32 %v376, %v664
    %v729 = vadd.f32 %v487, %v665
    %v730 = vadd.f32 %v489, %v666
    %v731 = vadd.f32 %v378, %v667
    %v732 = vadd.f32 %v380, %v668
    %v733 = vadd.f32 %v491, %v669
    %v734 = vadd.f32 %v493, %v670
    %v735 = vadd.f32 %v384, %v671
    %v736 = vadd.f32 %v386, %v672
    %v737 = vadd.f32 %v497, %v673
    %v738 = vadd.f32 %v499, %v674
    %v739 = vadd.f32 %v388, %v675
    %v740 = vadd.f32 %v390, %v676
    %v741 = vadd.f32 %v501, %v677
    %v742 = vadd.f32 %v503, %v678
    %v743 = vadd.f32 %v394, %v679
    %v744 = vadd.f32 %v396, %v680
    %v745 = vadd.f32 %v507, %v681
    %v746 = vadd.f32 %v509, %v682
    %v747 = vadd.f32 %v398, %v683
    %v748 = vadd.f32 %v400, %v684
    %v749 = vadd.f32 %v511, %v685
    %v750 = vadd.f32 %v513, %v686
    %v751 = vadd.f32 %v404, %v687
    %v752 = vadd.f32 %v406, %v688
    %v753 = vadd.f32 %v517, %v689
    %v754 = vadd.f32 %v519, %v690
    %v755 = vadd.f32 %v408, %v691
    %v756 = vadd.f32 %v410, %v692
    %v757 = vadd.f32 %v521, %v693
    %v758 = vadd.f32 %v523, %v694
    %v759 = vadd.f32 %v414, %v695
    %v760 = vadd.f32 %v416, %v696
    %v761 = vadd.f32 %v527, %v697
    %v762 = vadd.f32 %v529, %v698
    %v763 = vadd.f32 %v418, %v699
    %v764 = vadd.f32 %v420, %v700
    %v765 = vadd.f32 %v531, %v701
    %v766 = vadd.f32 %v533, %v702
    %v767 = vadd.f32 %v424, %v703
    %v768 = vadd.f32 %v426, %v704
    %v769 = vadd.f32 %v537, %v705
    %v770 = vadd.f32 %v539, %v706
    %v771 = vadd.f32 %v428, %v707
    %v772 = vadd.f32 %v430, %v708
    %v773 = vadd.f32 %v541, %v709
    %v774 = vadd.f32 %v543, %v710
    %v775 = vadd.f32 %v434, %v711
    %v776 = vadd.f32 %v436, %v712
    %v777 = vadd.f32 %v547, %v713
    %v778 = vadd.f32 %v549, %v714
    %v779 = vadd.f32 %v438, %v715
    %v780 = vadd.f32 %v440, %v716
    %v781 = vadd.f32 %v551, %v717
    %v782 = vadd.f32 %v553, %v718
    %v783 = vld [vmem:[%s4] sm:$0xf]
    %v785 = vlaneseq
    %v786 = vshrl.u32 %v785, 7
    %v787 = vsub.s32 0, %v786
    %v788 = vrot.slane %v783, %v787
    %v789 = vlaneseq
    %v790 = vshrl.u32 %v789, 7
    %v791 = vsub.s32 1, %v790
    %v792 = vrot.slane %v783, %v791
    %v793 = vlaneseq
    %v794 = vshrl.u32 %v793, 7
    %v795 = vsub.s32 2, %v794
    %v796 = vrot.slane %v783, %v795
    %v797 = vlaneseq
    %v798 = vshrl.u32 %v797, 7
    %v799 = vsub.s32 3, %v798
    %v800 = vrot.slane %v783, %v799
    %v805 = vadd.f32 %v719, %v788
    %v806 = vadd.f32 %v720, %v792
    %v807 = vadd.f32 %v721, %v796
    %v808 = vadd.f32 %v722, %v800
    %v809 = vadd.f32 %v723, %v788
    %v810 = vadd.f32 %v724, %v792
    %v811 = vadd.f32 %v725, %v796
    %v812 = vadd.f32 %v726, %v800
    %v813 = vadd.f32 %v727, %v788
    %v814 = vadd.f32 %v728, %v792
    %v815 = vadd.f32 %v729, %v796
    %v816 = vadd.f32 %v730, %v800
    %v817 = vadd.f32 %v731, %v788
    %v818 = vadd.f32 %v732, %v792
    %v819 = vadd.f32 %v733, %v796
    %v820 = vadd.f32 %v734, %v800
    %v821 = vadd.f32 %v735, %v788
    %v822 = vadd.f32 %v736, %v792
    %v823 = vadd.f32 %v737, %v796
    %v824 = vadd.f32 %v738, %v800
    %v825 = vadd.f32 %v739, %v788
    %v826 = vadd.f32 %v740, %v792
    %v827 = vadd.f32 %v741, %v796
    %v828 = vadd.f32 %v742, %v800
    %v829 = vadd.f32 %v743, %v788
    %v830 = vadd.f32 %v744, %v792
    %v831 = vadd.f32 %v745, %v796
    %v832 = vadd.f32 %v746, %v800
    %v833 = vadd.f32 %v747, %v788
    %v834 = vadd.f32 %v748, %v792
    %v835 = vadd.f32 %v749, %v796
    %v836 = vadd.f32 %v750, %v800
    %v837 = vadd.f32 %v751, %v788
    %v838 = vadd.f32 %v752, %v792
    %v839 = vadd.f32 %v753, %v796
    %v840 = vadd.f32 %v754, %v800
    %v841 = vadd.f32 %v755, %v788
    %v842 = vadd.f32 %v756, %v792
    %v843 = vadd.f32 %v757, %v796
    %v844 = vadd.f32 %v758, %v800
    %v845 = vadd.f32 %v759, %v788
    %v846 = vadd.f32 %v760, %v792
    %v847 = vadd.f32 %v761, %v796
    %v848 = vadd.f32 %v762, %v800
    %v849 = vadd.f32 %v763, %v788
    %v850 = vadd.f32 %v764, %v792
    %v851 = vadd.f32 %v765, %v796
    %v852 = vadd.f32 %v766, %v800
    %v853 = vadd.f32 %v767, %v788
    %v854 = vadd.f32 %v768, %v792
    %v855 = vadd.f32 %v769, %v796
    %v856 = vadd.f32 %v770, %v800
    %v857 = vadd.f32 %v771, %v788
    %v858 = vadd.f32 %v772, %v792
    %v859 = vadd.f32 %v773, %v796
    %v860 = vadd.f32 %v774, %v800
    %v861 = vadd.f32 %v775, %v788
    %v862 = vadd.f32 %v776, %v792
    %v863 = vadd.f32 %v777, %v796
    %v864 = vadd.f32 %v778, %v800
    %v865 = vadd.f32 %v779, %v788
    %v866 = vadd.f32 %v780, %v792
    %v867 = vadd.f32 %v781, %v796
    %v868 = vadd.f32 %v782, %v800
    %v869 = vmax.f32 %v805, 0.0
    %v870 = vmax.f32 %v806, 0.0
    %v871 = vmax.f32 %v807, 0.0
    %v872 = vmax.f32 %v808, 0.0
    %v873 = vmax.f32 %v809, 0.0
    %v874 = vmax.f32 %v810, 0.0
    %v875 = vmax.f32 %v811, 0.0
    %v876 = vmax.f32 %v812, 0.0
    %v877 = vmax.f32 %v813, 0.0
    %v878 = vmax.f32 %v814, 0.0
    %v879 = vmax.f32 %v815, 0.0
    %v880 = vmax.f32 %v816, 0.0
    %v881 = vmax.f32 %v817, 0.0
    %v882 = vmax.f32 %v818, 0.0
    %v883 = vmax.f32 %v819, 0.0
    %v884 = vmax.f32 %v820, 0.0
    %v885 = vmax.f32 %v821, 0.0
    %v886 = vmax.f32 %v822, 0.0
    %v887 = vmax.f32 %v823, 0.0
    %v888 = vmax.f32 %v824, 0.0
    %v889 = vmax.f32 %v825, 0.0
    %v890 = vmax.f32 %v826, 0.0
    %v891 = vmax.f32 %v827, 0.0
    %v892 = vmax.f32 %v828, 0.0
    %v893 = vmax.f32 %v829, 0.0
    %v894 = vmax.f32 %v830, 0.0
    %v895 = vmax.f32 %v831, 0.0
    %v896 = vmax.f32 %v832, 0.0
    %v897 = vmax.f32 %v833, 0.0
    %v898 = vmax.f32 %v834, 0.0
    %v899 = vmax.f32 %v835, 0.0
    %v900 = vmax.f32 %v836, 0.0
    %v901 = vmax.f32 %v837, 0.0
    %v902 = vmax.f32 %v838, 0.0
    %v903 = vmax.f32 %v839, 0.0
    %v904 = vmax.f32 %v840, 0.0
    %v905 = vmax.f32 %v841, 0.0
    %v906 = vmax.f32 %v842, 0.0
    %v907 = vmax.f32 %v843, 0.0
    %v908 = vmax.f32 %v844, 0.0
    %v909 = vmax.f32 %v845, 0.0
    %v910 = vmax.f32 %v846, 0.0
    %v911 = vmax.f32 %v847, 0.0
    %v912 = vmax.f32 %v848, 0.0
    %v913 = vmax.f32 %v849, 0.0
    %v914 = vmax.f32 %v850, 0.0
    %v915 = vmax.f32 %v851, 0.0
    %v916 = vmax.f32 %v852, 0.0
    %v917 = vmax.f32 %v853, 0.0
    %v918 = vmax.f32 %v854, 0.0
    %v919 = vmax.f32 %v855, 0.0
    %v920 = vmax.f32 %v856, 0.0
    %v921 = vmax.f32 %v857, 0.0
    %v922 = vmax.f32 %v858, 0.0
    %v923 = vmax.f32 %v859, 0.0
    %v924 = vmax.f32 %v860, 0.0
    %v925 = vmax.f32 %v861, 0.0
    %v926 = vmax.f32 %v862, 0.0
    %v927 = vmax.f32 %v863, 0.0
    %v928 = vmax.f32 %v864, 0.0
    %v929 = vmax.f32 %v865, 0.0
    %v930 = vmax.f32 %v866, 0.0
    %v931 = vmax.f32 %v867, 0.0
    %v932 = vmax.f32 %v868, 0.0
    %v933 = vpack.c.bf16 %v873, %v869
    %v934 = vpack.c.bf16 %v874, %v870
    %v935 = vpack.c.bf16 %v875, %v871
    %v936 = vpack.c.bf16 %v876, %v872
    %v937 = vpack.c.bf16 %v881, %v877
    %v938 = vpack.c.bf16 %v882, %v878
    %v939 = vpack.c.bf16 %v883, %v879
    %v940 = vpack.c.bf16 %v884, %v880
    %v941 = vpack.c.bf16 %v889, %v885
    %v942 = vpack.c.bf16 %v890, %v886
    %v943 = vpack.c.bf16 %v891, %v887
    %v944 = vpack.c.bf16 %v892, %v888
    %v945 = vpack.c.bf16 %v897, %v893
    %v946 = vpack.c.bf16 %v898, %v894
    %v947 = vpack.c.bf16 %v899, %v895
    %v948 = vpack.c.bf16 %v900, %v896
    %v949 = vpack.c.bf16 %v905, %v901
    %v950 = vpack.c.bf16 %v906, %v902
    %v951 = vpack.c.bf16 %v907, %v903
    %v952 = vpack.c.bf16 %v908, %v904
    %v953 = vpack.c.bf16 %v913, %v909
    %v954 = vpack.c.bf16 %v914, %v910
    %v955 = vpack.c.bf16 %v915, %v911
    %v956 = vpack.c.bf16 %v916, %v912
    %v957 = vpack.c.bf16 %v921, %v917
    %v958 = vpack.c.bf16 %v922, %v918
    %v959 = vpack.c.bf16 %v923, %v919
    %v960 = vpack.c.bf16 %v924, %v920
    %v961 = vpack.c.bf16 %v929, %v925
    %v962 = vpack.c.bf16 %v930, %v926
    %v963 = vpack.c.bf16 %v931, %v927
    %v964 = vpack.c.bf16 %v932, %v928
    %v965 = vld [vmem:[%s5] sm:$0xf]
    %v966 = vld [vmem:[%s5 + $0x4] sm:$0xf]
    %v967 = vld [vmem:[%s5 + $0x8] sm:$0xf]
    %v968 = vld [vmem:[%s5 + $0xc] sm:$0xf]
    %v969 = vld [vmem:[%s5 + $0x10] sm:$0xf]
    %v970 = vld [vmem:[%s5 + $0x14] sm:$0xf]
    %v971 = vld [vmem:[%s5 + $0x18] sm:$0xf]
    %v972 = vld [vmem:[%s5 + $0x1c] sm:$0xf]
    %v973 = vld [vmem:[%s5 + $0x20] sm:$0xf]
    %v974 = vld [vmem:[%s5 + $0x24] sm:$0xf]
    %v975 = vld [vmem:[%s5 + $0x28] sm:$0xf]
    %v976 = vld [vmem:[%s5 + $0x2c] sm:$0xf]
    %v977 = vld [vmem:[%s5 + $0x30] sm:$0xf]
    %v978 = vld [vmem:[%s5 + $0x34] sm:$0xf]
    %v979 = vld [vmem:[%s5 + $0x38] sm:$0xf]
    %v980 = vld [vmem:[%s5 + $0x3c] sm:$0xf]
    %v981 = vld [vmem:[%s5 + $0x40] sm:$0xf]
    %v982 = vld [vmem:[%s5 + $0x44] sm:$0xf]
    %v983 = vld [vmem:[%s5 + $0x48] sm:$0xf]
    %v984 = vld [vmem:[%s5 + $0x4c] sm:$0xf]
    %v985 = vld [vmem:[%s5 + $0x50] sm:$0xf]
    %v986 = vld [vmem:[%s5 + $0x54] sm:$0xf]
    %v987 = vld [vmem:[%s5 + $0x58] sm:$0xf]
    %v988 = vld [vmem:[%s5 + $0x5c] sm:$0xf]
    %v989 = vld [vmem:[%s5 + $0x60] sm:$0xf]
    %v990 = vld [vmem:[%s5 + $0x64] sm:$0xf]
    %v991 = vld [vmem:[%s5 + $0x68] sm:$0xf]
    %v992 = vld [vmem:[%s5 + $0x6c] sm:$0xf]
    %v993 = vld [vmem:[%s5 + $0x70] sm:$0xf]
    %v994 = vld [vmem:[%s5 + $0x74] sm:$0xf]
    %v995 = vld [vmem:[%s5 + $0x78] sm:$0xf]
    %v996 = vld [vmem:[%s5 + $0x7c] sm:$0xf]
    %v997 = vld [vmem:[%s5 + $0x80] sm:$0xf]
    %v998 = vld [vmem:[%s5 + $0x84] sm:$0xf]
    %v999 = vld [vmem:[%s5 + $0x88] sm:$0xf]
    %v1000 = vld [vmem:[%s5 + $0x8c] sm:$0xf]
    %v1001 = vld [vmem:[%s5 + $0x90] sm:$0xf]
    %v1002 = vld [vmem:[%s5 + $0x94] sm:$0xf]
    %v1003 = vld [vmem:[%s5 + $0x98] sm:$0xf]
    %v1004 = vld [vmem:[%s5 + $0x9c] sm:$0xf]
    %v1005 = vld [vmem:[%s5 + $0xa0] sm:$0xf]
    %v1006 = vld [vmem:[%s5 + $0xa4] sm:$0xf]
    %v1007 = vld [vmem:[%s5 + $0xa8] sm:$0xf]
    %v1008 = vld [vmem:[%s5 + $0xac] sm:$0xf]
    %v1009 = vld [vmem:[%s5 + $0xb0] sm:$0xf]
    %v1010 = vld [vmem:[%s5 + $0xb4] sm:$0xf]
    %v1011 = vld [vmem:[%s5 + $0xb8] sm:$0xf]
    %v1012 = vld [vmem:[%s5 + $0xbc] sm:$0xf]
    %v1013 = vld [vmem:[%s5 + $0xc0] sm:$0xf]
    %v1014 = vld [vmem:[%s5 + $0xc4] sm:$0xf]
    %v1015 = vld [vmem:[%s5 + $0xc8] sm:$0xf]
    %v1016 = vld [vmem:[%s5 + $0xcc] sm:$0xf]
    %v1017 = vld [vmem:[%s5 + $0xd0] sm:$0xf]
    %v1018 = vld [vmem:[%s5 + $0xd4] sm:$0xf]
    %v1019 = vld [vmem:[%s5 + $0xd8] sm:$0xf]
    %v1020 = vld [vmem:[%s5 + $0xdc] sm:$0xf]
    %v1021 = vld [vmem:[%s5 + $0xe0] sm:$0xf]
    %v1022 = vld [vmem:[%s5 + $0xe4] sm:$0xf]
    %v1023 = vld [vmem:[%s5 + $0xe8] sm:$0xf]
    %v1024 = vld [vmem:[%s5 + $0xec] sm:$0xf]
    %v1025 = vld [vmem:[%s5 + $0xf0] sm:$0xf]
    %v1026 = vld [vmem:[%s5 + $0xf4] sm:$0xf]
    %v1027 = vld [vmem:[%s5 + $0xf8] sm:$0xf]
    %v1028 = vld [vmem:[%s5 + $0xfc] sm:$0xf]
    %v1029 = vld [vmem:[%s6] sm:$0x1]
    %v1031 = vlaneseq
    %v1032 = vshrl.u32 %v1031, 7
    %v1033 = vsub.s32 0, %v1032
    %v1034 = vrot.slane %v1029, %v1033
    %v1100 = vunpack.c.l.b16 %v965
    %v1101 = vunpack.c.l.b16 %v966
    %v1102 = vunpack.c.l.b16 %v967
    %v1103 = vunpack.c.l.b16 %v968
    %v1104 = vunpack.c.l.b16 %v969
    %v1105 = vunpack.c.l.b16 %v970
    %v1106 = vunpack.c.l.b16 %v971
    %v1107 = vunpack.c.l.b16 %v972
    %v1108 = vunpack.c.l.b16 %v973
    %v1109 = vunpack.c.l.b16 %v974
    %v1110 = vunpack.c.l.b16 %v975
    %v1111 = vunpack.c.l.b16 %v976
    %v1112 = vunpack.c.l.b16 %v977
    %v1113 = vunpack.c.l.b16 %v978
    %v1114 = vunpack.c.l.b16 %v979
    %v1115 = vunpack.c.l.b16 %v980
    %v1116 = vunpack.c.l.b16 %v981
    %v1117 = vunpack.c.l.b16 %v982
    %v1118 = vunpack.c.l.b16 %v983
    %v1119 = vunpack.c.l.b16 %v984
    %v1120 = vunpack.c.l.b16 %v985
    %v1121 = vunpack.c.l.b16 %v986
    %v1122 = vunpack.c.l.b16 %v987
    %v1123 = vunpack.c.l.b16 %v988
    %v1124 = vunpack.c.l.b16 %v989
    %v1125 = vunpack.c.l.b16 %v990
    %v1126 = vunpack.c.l.b16 %v991
    %v1127 = vunpack.c.l.b16 %v992
    %v1128 = vunpack.c.l.b16 %v993
    %v1129 = vunpack.c.l.b16 %v994
    %v1130 = vunpack.c.l.b16 %v995
    %v1131 = vunpack.c.l.b16 %v996
    %v1132 = vunpack.c.l.b16 %v997
    %v1133 = vunpack.c.l.b16 %v998
    %v1134 = vunpack.c.l.b16 %v999
    %v1135 = vunpack.c.l.b16 %v1000
    %v1136 = vunpack.c.l.b16 %v1001
    %v1137 = vunpack.c.l.b16 %v1002
    %v1138 = vunpack.c.l.b16 %v1003
    %v1139 = vunpack.c.l.b16 %v1004
    %v1140 = vunpack.c.l.b16 %v1005
    %v1141 = vunpack.c.l.b16 %v1006
    %v1142 = vunpack.c.l.b16 %v1007
    %v1143 = vunpack.c.l.b16 %v1008
    %v1144 = vunpack.c.l.b16 %v1009
    %v1145 = vunpack.c.l.b16 %v1010
    %v1146 = vunpack.c.l.b16 %v1011
    %v1147 = vunpack.c.l.b16 %v1012
    %v1148 = vunpack.c.l.b16 %v1013
    %v1149 = vunpack.c.l.b16 %v1014
    %v1150 = vunpack.c.l.b16 %v1015
    %v1151 = vunpack.c.l.b16 %v1016
    %v1152 = vunpack.c.l.b16 %v1017
    %v1153 = vunpack.c.l.b16 %v1018
    %v1154 = vunpack.c.l.b16 %v1019
    %v1155 = vunpack.c.l.b16 %v1020
    %v1156 = vunpack.c.l.b16 %v1021
    %v1157 = vunpack.c.l.b16 %v1022
    %v1158 = vunpack.c.l.b16 %v1023
    %v1159 = vunpack.c.l.b16 %v1024
    %v1160 = vunpack.c.l.b16 %v1025
    %v1161 = vunpack.c.l.b16 %v1026
    %v1162 = vunpack.c.l.b16 %v1027
    %v1163 = vunpack.c.l.b16 %v1028
    %v1164 = vpack.c.b16 %v1101, %v1100
    %v1165 = vpack.c.b16 %v1103, %v1102
    %v1166 = vpack.c.b16 %v1105, %v1104
    %v1167 = vpack.c.b16 %v1107, %v1106
    %v1168 = vpack.c.b16 %v1109, %v1108
    %v1169 = vpack.c.b16 %v1111, %v1110
    %v1170 = vpack.c.b16 %v1113, %v1112
    %v1171 = vpack.c.b16 %v1115, %v1114
    %v1172 = vpack.c.b16 %v1117, %v1116
    %v1173 = vpack.c.b16 %v1119, %v1118
    %v1174 = vpack.c.b16 %v1121, %v1120
    %v1175 = vpack.c.b16 %v1123, %v1122
    %v1176 = vpack.c.b16 %v1125, %v1124
    %v1177 = vpack.c.b16 %v1127, %v1126
    %v1178 = vpack.c.b16 %v1129, %v1128
    %v1179 = vpack.c.b16 %v1131, %v1130
    %v1180 = vpack.c.b16 %v1133, %v1132
    %v1181 = vpack.c.b16 %v1135, %v1134
    %v1182 = vpack.c.b16 %v1137, %v1136
    %v1183 = vpack.c.b16 %v1139, %v1138
    %v1184 = vpack.c.b16 %v1141, %v1140
    %v1185 = vpack.c.b16 %v1143, %v1142
    %v1186 = vpack.c.b16 %v1145, %v1144
    %v1187 = vpack.c.b16 %v1147, %v1146
    %v1188 = vpack.c.b16 %v1149, %v1148
    %v1189 = vpack.c.b16 %v1151, %v1150
    %v1190 = vpack.c.b16 %v1153, %v1152
    %v1191 = vpack.c.b16 %v1155, %v1154
    %v1192 = vpack.c.b16 %v1157, %v1156
    %v1193 = vpack.c.b16 %v1159, %v1158
    %v1194 = vpack.c.b16 %v1161, %v1160
    %v1195 = vpack.c.b16 %v1163, %v1162
    %1228 = vmatprep.subr.bf16.mxu0 0
    %1229 = vmatpush1.bf16.msra.mxu0 %v1164
    %1230 = vmatprep.subr.bf16.mxu0 0
    %1231 = vmatpush1.bf16.msra.mxu0 %v1165
    %1232 = vmatprep.subr.bf16.mxu0 0
    %1233 = vmatpush1.bf16.msra.mxu0 %v1166
    %1234 = vmatprep.subr.bf16.mxu0 0
    %1235 = vmatpush1.bf16.msra.mxu0 %v1167
    %1236 = vmatprep.subr.bf16.mxu0 0
    %1237 = vmatpush1.bf16.msra.mxu0 %v1168
    %1238 = vmatprep.subr.bf16.mxu0 0
    %1239 = vmatpush1.bf16.msra.mxu0 %v1169
    %1240 = vmatprep.subr.bf16.mxu0 0
    %1241 = vmatpush1.bf16.msra.mxu0 %v1170
    %1242 = vmatprep.subr.bf16.mxu0 0
    %1243 = vmatpush1.bf16.msra.mxu0 %v1171
    %1244 = vmatprep.subr.bf16.mxu0 0
    %1245 = vmatpush1.bf16.msra.mxu0 %v1172
    %1246 = vmatprep.subr.bf16.mxu0 0
    %1247 = vmatpush1.bf16.msra.mxu0 %v1173
    %1248 = vmatprep.subr.bf16.mxu0 0
    %1249 = vmatpush1.bf16.msra.mxu0 %v1174
    %1250 = vmatprep.subr.bf16.mxu0 0
    %1251 = vmatpush1.bf16.msra.mxu0 %v1175
    %1252 = vmatprep.subr.bf16.mxu0 0
    %1253 = vmatpush1.bf16.msra.mxu0 %v1176
    %1254 = vmatprep.subr.bf16.mxu0 0
    %1255 = vmatpush1.bf16.msra.mxu0 %v1177
    %1256 = vmatprep.subr.bf16.mxu0 0
    %1257 = vmatpush1.bf16.msra.mxu0 %v1178
    %1258 = vmatprep.subr.bf16.mxu0 0
    %1259 = vmatpush1.bf16.msra.mxu0 %v1179
    %1260 = vmatprep.mubr.bf16.mxu0 %v934
    %1261 = vmatmul.mubr.bf16.gmra.mrb[0].mxu0 %v933
    %v1262 = vpop.f32.mrb[0].mxu0
    %v1263 = vadd.f32 %v1034, %v1262
    %v1264 = vpop.f32.mrb[0].mxu0
    %v1265 = vpop.f32.mrb[0].mxu0
    %v1266 = vadd.f32 %v1034, %v1265
    %v1267 = vpop.f32.mrb[0].mxu0
    %1268 = vmatprep.mubr.bf16.mxu0 %v938
    %1269 = vmatmul.mubr.bf16.gmra.mrb[0].mxu0 %v937
    %v1270 = vpop.f32.mrb[0].mxu0
    %v1271 = vadd.f32 %v1034, %v1270
    %v1272 = vpop.f32.mrb[0].mxu0
    %v1273 = vpop.f32.mrb[0].mxu0
    %v1274 = vadd.f32 %v1034, %v1273
    %v1275 = vpop.f32.mrb[0].mxu0
    %1276 = vmatprep.mubr.bf16.mxu0 %v942
    %1277 = vmatmul.mubr.bf16.gmra.mrb[0].mxu0 %v941
    %v1278 = vpop.f32.mrb[0].mxu0
    %v1279 = vadd.f32 %v1034, %v1278
    %v1280 = vpop.f32.mrb[0].mxu0
    %v1281 = vpop.f32.mrb[0].mxu0
    %v1282 = vadd.f32 %v1034, %v1281
    %v1283 = vpop.f32.mrb[0].mxu0
    %1284 = vmatprep.mubr.bf16.mxu0 %v946
    %1285 = vmatmul.mubr.bf16.gmra.mrb[0].mxu0 %v945
    %v1286 = vpop.f32.mrb[0].mxu0
    %v1287 = vadd.f32 %v1034, %v1286
    %v1288 = vpop.f32.mrb[0].mxu0
    %v1289 = vpop.f32.mrb[0].mxu0
    %v1290 = vadd.f32 %v1034, %v1289
    %v1291 = vpop.f32.mrb[0].mxu0
    %1292 = vmatprep.mubr.bf16.mxu0 %v950
    %1293 = vmatmul.mubr.bf16.gmra.mrb[0].mxu0 %v949
    %v1294 = vpop.f32.mrb[0].mxu0
    %v1295 = vadd.f32 %v1034, %v1294
    %v1296 = vpop.f32.mrb[0].mxu0
    %v1297 = vpop.f32.mrb[0].mxu0
    %v1298 = vadd.f32 %v1034, %v1297
    %v1299 = vpop.f32.mrb[0].mxu0
    %1300 = vmatprep.mubr.bf16.mxu0 %v954
    %1301 = vmatmul.mubr.bf16.gmra.mrb[0].mxu0 %v953
    %v1302 = vpop.f32.mrb[0].mxu0
    %v1303 = vadd.f32 %v1034, %v1302
    %v1304 = vpop.f32.mrb[0].mxu0
    %v1305 = vpop.f32.mrb[0].mxu0
    %v1306 = vadd.f32 %v1034, %v1305
    %v1307 = vpop.f32.mrb[0].mxu0
    %1308 = vmatprep.mubr.bf16.mxu0 %v958
    %1309 = vmatmul.mubr.bf16.gmra.mrb[0].mxu0 %v957
    %v1310 = vpop.f32.mrb[0].mxu0
    %v1311 = vadd.f32 %v1034, %v1310
    %v1312 = vpop.f32.mrb[0].mxu0
    %v1313 = vpop.f32.mrb[0].mxu0
    %v1314 = vadd.f32 %v1034, %v1313
    %v1315 = vpop.f32.mrb[0].mxu0
    %1316 = vmatprep.mubr.bf16.mxu0 %v962
    %1317 = vmatmul.mubr.bf16.gmra.mrb[0].mxu0 %v961
    %v1318 = vpop.f32.mrb[0].mxu0
    %v1319 = vadd.f32 %v1034, %v1318
    %v1320 = vpop.f32.mrb[0].mxu0
    %v1321 = vpop.f32.mrb[0].mxu0
    %v1322 = vadd.f32 %v1034, %v1321
    %v1323 = vpop.f32.mrb[0].mxu0
    %1324 = vdwg.mxu0
    %1325 = vmatprep.subr.bf16.mxu0 0
    %1326 = vmatpush1.bf16.msra.mxu0 %v1180
    %1327 = vmatprep.subr.bf16.mxu0 0
    %1328 = vmatpush1.bf16.msra.mxu0 %v1181
    %1329 = vmatprep.subr.bf16.mxu0 0
    %1330 = vmatpush1.bf16.msra.mxu0 %v1182
    %1331 = vmatprep.subr.bf16.mxu0 0
    %1332 = vmatpush1.bf16.msra.mxu0 %v1183
    %1333 = vmatprep.subr.bf16.mxu0 0
    %1334 = vmatpush1.bf16.msra.mxu0 %v1184
    %1335 = vmatprep.subr.bf16.mxu0 0
    %1336 = vmatpush1.bf16.msra.mxu0 %v1185
    %1337 = vmatprep.subr.bf16.mxu0 0
    %1338 = vmatpush1.bf16.msra.mxu0 %v1186
    %1339 = vmatprep.subr.bf16.mxu0 0
    %1340 = vmatpush1.bf16.msra.mxu0 %v1187
    %1341 = vmatprep.subr.bf16.mxu0 0
    %1342 = vmatpush1.bf16.msra.mxu0 %v1188
    %1343 = vmatprep.subr.bf16.mxu0 0
    %1344 = vmatpush1.bf16.msra.mxu0 %v1189
    %1345 = vmatprep.subr.bf16.mxu0 0
    %1346 = vmatpush1.bf16.msra.mxu0 %v1190
    %1347 = vmatprep.subr.bf16.mxu0 0
    %1348 = vmatpush1.bf16.msra.mxu0 %v1191
    %1349 = vmatprep.subr.bf16.mxu0 0
    %1350 = vmatpush1.bf16.msra.mxu0 %v1192
    %1351 = vmatprep.subr.bf16.mxu0 0
    %1352 = vmatpush1.bf16.msra.mxu0 %v1193
    %1353 = vmatprep.subr.bf16.mxu0 0
    %1354 = vmatpush1.bf16.msra.mxu0 %v1194
    %1355 = vmatprep.subr.bf16.mxu0 0
    %1356 = vmatpush1.bf16.msra.mxu0 %v1195
    %1357 = vmatprep.mubr.bf16.mxu0 %v936
    %1358 = vmatmul.mubr.bf16.gmra.mrb[0].mxu0 %v935
    %v1359 = vpop.f32.mrb[0].mxu0
    %v1360 = vadd.f32 %v1263, %v1359
    %v1361 = vpop.f32.mrb[0].mxu0
    %v1362 = vpop.f32.mrb[0].mxu0
    %v1363 = vadd.f32 %v1266, %v1362
    %v1364 = vpop.f32.mrb[0].mxu0
    %1365 = vmatprep.mubr.bf16.mxu0 %v940
    %1366 = vmatmul.mubr.bf16.gmra.mrb[0].mxu0 %v939
    %v1367 = vpop.f32.mrb[0].mxu0
    %v1368 = vadd.f32 %v1271, %v1367
    %v1369 = vpop.f32.mrb[0].mxu0
    %v1370 = vpop.f32.mrb[0].mxu0
    %v1371 = vadd.f32 %v1274, %v1370
    %v1372 = vpop.f32.mrb[0].mxu0
    %1373 = vmatprep.mubr.bf16.mxu0 %v944
    %1374 = vmatmul.mubr.bf16.gmra.mrb[0].mxu0 %v943
    %v1375 = vpop.f32.mrb[0].mxu0
    %v1376 = vadd.f32 %v1279, %v1375
    %v1377 = vpop.f32.mrb[0].mxu0
    %v1378 = vpop.f32.mrb[0].mxu0
    %v1379 = vadd.f32 %v1282, %v1378
    %v1380 = vpop.f32.mrb[0].mxu0
    %1381 = vmatprep.mubr.bf16.mxu0 %v948
    %1382 = vmatmul.mubr.bf16.gmra.mrb[0].mxu0 %v947
    %v1383 = vpop.f32.mrb[0].mxu0
    %v1384 = vadd.f32 %v1287, %v1383
    %v1385 = vpop.f32.mrb[0].mxu0
    %v1386 = vpop.f32.mrb[0].mxu0
    %v1387 = vadd.f32 %v1290, %v1386
    %v1388 = vpop.f32.mrb[0].mxu0
    %1389 = vmatprep.mubr.bf16.mxu0 %v952
    %1390 = vmatmul.mubr.bf16.gmra.mrb[0].mxu0 %v951
    %v1391 = vpop.f32.mrb[0].mxu0
    %v1392 = vadd.f32 %v1295, %v1391
    %v1393 = vpop.f32.mrb[0].mxu0
    %v1394 = vpop.f32.mrb[0].mxu0
    %v1395 = vadd.f32 %v1298, %v1394
    %v1396 = vpop.f32.mrb[0].mxu0
    %1397 = vmatprep.mubr.bf16.mxu0 %v956
    %1398 = vmatmul.mubr.bf16.gmra.mrb[0].mxu0 %v955
    %v1399 = vpop.f32.mrb[0].mxu0
    %v1400 = vadd.f32 %v1303, %v1399
    %v1401 = vpop.f32.mrb[0].mxu0
    %v1402 = vpop.f32.mrb[0].mxu0
    %v1403 = vadd.f32 %v1306, %v1402
    %v1404 = vpop.f32.mrb[0].mxu0
    %1405 = vmatprep.mubr.bf16.mxu0 %v960
    %1406 = vmatmul.mubr.bf16.gmra.mrb[0].mxu0 %v959
    %v1407 = vpop.f32.mrb[0].mxu0
    %v1408 = vadd.f32 %v1311, %v1407
    %v1409 = vpop.f32.mrb[0].mxu0
    %v1410 = vpop.f32.mrb[0].mxu0
    %v1411 = vadd.f32 %v1314, %v1410
    %v1412 = vpop.f32.mrb[0].mxu0
    %1413 = vmatprep.mubr.bf16.mxu0 %v964
    %1414 = vmatmul.mubr.bf16.gmra.mrb[0].mxu0 %v963
    %v1415 = vpop.f32.mrb[0].mxu0
    %v1416 = vadd.f32 %v1319, %v1415
    %v1417 = vpop.f32.mrb[0].mxu0
    %v1418 = vpop.f32.mrb[0].mxu0
    %v1419 = vadd.f32 %v1322, %v1418
    %v1420 = vpop.f32.mrb[0].mxu0
    %1421 = vdwg.mxu0
    %v1422 = vmax.f32 %v1360, 0.0
    %v1423 = vmax.f32 %v1363, 0.0
    %v1424 = vmax.f32 %v1368, 0.0
    %v1425 = vmax.f32 %v1371, 0.0
    %v1426 = vmax.f32 %v1376, 0.0
    %v1427 = vmax.f32 %v1379, 0.0
    %v1428 = vmax.f32 %v1384, 0.0
    %v1429 = vmax.f32 %v1387, 0.0
    %v1430 = vmax.f32 %v1392, 0.0
    %v1431 = vmax.f32 %v1395, 0.0
    %v1432 = vmax.f32 %v1400, 0.0
    %v1433 = vmax.f32 %v1403, 0.0
    %v1434 = vmax.f32 %v1408, 0.0
    %v1435 = vmax.f32 %v1411, 0.0
    %v1436 = vmax.f32 %v1416, 0.0
    %v1437 = vmax.f32 %v1419, 0.0
    %v1438 = vld [vmem:[%s7] sm:$0xff]
    %v1439 = vld [vmem:[%s7 + $0x8] sm:$0xff]
    %v1440 = vld [vmem:[%s7 + $0x10] sm:$0xff]
    %v1441 = vld [vmem:[%s7 + $0x18] sm:$0xff]
    %s1442 = scalar_lea.vmem %s7, 32
    %v1443 = vld [vmem:[%s1442] sm:$0xff]
    %v1444 = vld [vmem:[%s1442 + $0x8] sm:$0xff]
    %v1445 = vld [vmem:[%s1442 + $0x10] sm:$0xff]
    %v1446 = vld [vmem:[%s1442 + $0x18] sm:$0xff]
    %v1463 = vrot.slane %v1422, 1
    %vm1464 = vcmask 1041409
    %v1465 = vsel %vm1464, %v1423, %v1463
    %v1466 = vrot.slane %v1424, 7
    %vm1467 = vcmask 1042434
    %v1468 = vsel %vm1467, %v1466, %v1465
    %v1469 = vrot.slane %v1425, 6
    %vm1470 = vcmask 1043459
    %v1471 = vsel %vm1470, %v1469, %v1468
    %v1472 = vrot.slane %v1426, 5
    %vm1473 = vcmask 1044484
    %v1474 = vsel %vm1473, %v1472, %v1471
    %v1475 = vrot.slane %v1427, 4
    %vm1476 = vcmask 1045509
    %v1477 = vsel %vm1476, %v1475, %v1474
    %v1478 = vrot.slane %v1428, 3
    %vm1479 = vcmask 1046534
    %v1480 = vsel %vm1479, %v1478, %v1477
    %v1481 = vrot.slane %v1429, 2
    %vm1482 = vcmask 1047559
    %v1483 = vsel %vm1482, %v1481, %v1480
    %v1484 = vrot.slane %v1430, 1
    %v1485 = vsel %vm1464, %v1431, %v1484
    %v1486 = vrot.slane %v1432, 7
    %v1487 = vsel %vm1467, %v1486, %v1485
    %v1488 = vrot.slane %v1433, 6
    %v1489 = vsel %vm1470, %v1488, %v1487
    %v1490 = vrot.slane %v1434, 5
    %v1491 = vsel %vm1473, %v1490, %v1489
    %v1492 = vrot.slane %v1435, 4
    %v1493 = vsel %vm1476, %v1492, %v1491
    %v1494 = vrot.slane %v1436, 3
    %v1495 = vsel %vm1479, %v1494, %v1493
    %v1496 = vrot.slane %v1437, 2
    %v1497 = vsel %vm1482, %v1496, %v1495
    %v1498 = vsel %vm304, %v1483, 0
    %v1500 = vsel %vm304, %v1497, 0
    %1502 = vmatprep.subr.mxu0 0.0
    %1503 = vmatpush1.msra.mxu0 %v1443
    %1504 = vmatprep.subr.mxu0 0.0
    %1505 = vmatpush1.msra.mxu0 %v1444
    %1506 = vmatprep.subr.mxu0 0.0
    %1507 = vmatpush1.msra.mxu0 %v1445
    %1508 = vmatprep.subr.mxu0 0.0
    %1509 = vmatpush1.msra.mxu0 %v1446
    %1510 = vmatprep.subr.mxu0 0.0
    %1511 = vmatpush1.msra.mxu0 0.0
    %1512 = vmatprep.subr.mxu0 0.0
    %1513 = vmatpush1.msra.mxu0 0.0
    %1514 = vmatprep.subr.mxu0 0.0
    %1515 = vmatpush1.msra.mxu0 0.0
    %1516 = vmatprep.subr.mxu0 0.0
    %1517 = vmatpush1.msra.mxu0 0.0
    %1518 = vmatprep.subr.mxu0 0.0
    %1519 = vmatpush1.msra.mxu0 0.0
    %1520 = vmatprep.subr.mxu0 0.0
    %1521 = vmatpush1.msra.mxu0 0.0
    %1522 = vmatprep.subr.mxu0 0.0
    %1523 = vmatpush1.msra.mxu0 0.0
    %1524 = vmatprep.subr.mxu0 0.0
    %1525 = vmatpush1.msra.mxu0 0.0
    %1526 = vmatprep.subr.mxu0 0.0
    %1527 = vmatpush1.msra.mxu0 0.0
    %1528 = vmatprep.subr.mxu0 0.0
    %1529 = vmatpush1.msra.mxu0 0.0
    %1530 = vmatprep.subr.mxu0 0.0
    %1531 = vmatpush1.msra.mxu0 0.0
    %1532 = vmatprep.subr.mxu0 0.0
    %1533 = vmatpush1.msra.mxu0 0.0
    %1534 = vmatprep.subr.mxu0 0.0
    %1535 = vmatpush1.msra.mxu0 0.0
    %1536 = vmatprep.subr.mxu0 0.0
    %1537 = vmatpush1.msra.mxu0 0.0
    %1538 = vmatprep.subr.mxu0 0.0
    %1539 = vmatpush1.msra.mxu0 0.0
    %1540 = vmatprep.subr.mxu0 0.0
    %1541 = vmatpush1.msra.mxu0 0.0
    %1542 = vmatprep.subr.mxu0 0.0
    %1543 = vmatpush1.msra.mxu0 0.0
    %1544 = vmatprep.subr.mxu0 0.0
    %1545 = vmatpush1.msra.mxu0 0.0
    %1546 = vmatprep.subr.mxu0 0.0
    %1547 = vmatpush1.msra.mxu0 0.0
    %1548 = vmatprep.subr.mxu0 0.0
    %1549 = vmatpush1.msra.mxu0 0.0
    %1550 = vmatprep.subr.mxu0 0.0
    %1551 = vmatpush1.msra.mxu0 0.0
    %1552 = vmatprep.subr.mxu0 0.0
    %1553 = vmatpush1.msra.mxu0 0.0
    %1554 = vmatprep.subr.mxu0 0.0
    %1555 = vmatpush1.msra.mxu0 0.0
    %1556 = vmatprep.subr.mxu0 0.0
    %1557 = vmatpush1.msra.mxu0 0.0
    %1558 = vmatprep.subr.mxu0 0.0
    %1559 = vmatpush1.msra.mxu0 0.0
    %1560 = vmatprep.subr.mxu0 0.0
    %1561 = vmatpush1.msra.mxu0 0.0
    %1562 = vmatprep.subr.mxu0 0.0
    %1563 = vmatpush1.msra.mxu0 0.0
    %1564 = vmatprep.subr.mxu0 0.0
    %1565 = vmatpush1.msra.mxu0 0.0
    %1566 = vmatprep.mubr.f32.mxu0 0.0
    %1567 = vmatmul.mubr.f32.gmra.mrb[0].mxu0 %v1498
    %v1568 = vpop.f32.mrb[0].mxu0
    %v1569 = vadd.f32 0.0, %v1568
    %v1570 = vpop.f32.mrb[0].mxu0
    %1571 = vmatprep.mubr.f32.mxu0 0.0
    %1572 = vmatmul.mubr.f32.gmra.mrb[0].mxu0 %v1500
    %v1573 = vpop.f32.mrb[0].mxu0
    %v1574 = vadd.f32 0.0, %v1573
    %v1575 = vpop.f32.mrb[0].mxu0
    %1576 = vdwg.mxu0
    %v1577 = vrot.slane %v1423, 7
    %v1578 = vsel %vm1464, %v1577, %v1422
    %v1579 = vrot.slane %v1424, 6
    %v1580 = vsel %vm1467, %v1579, %v1578
    %v1581 = vrot.slane %v1425, 5
    %v1582 = vsel %vm1470, %v1581, %v1580
    %v1583 = vrot.slane %v1426, 4
    %v1584 = vsel %vm1473, %v1583, %v1582
    %v1585 = vrot.slane %v1427, 3
    %v1586 = vsel %vm1476, %v1585, %v1584
    %v1587 = vrot.slane %v1428, 2
    %v1588 = vsel %vm1479, %v1587, %v1586
    %v1589 = vrot.slane %v1429, 1
    %v1590 = vsel %vm1482, %v1589, %v1588
    %v1591 = vrot.slane %v1431, 7
    %v1592 = vsel %vm1464, %v1591, %v1430
    %v1593 = vrot.slane %v1432, 6
    %v1594 = vsel %vm1467, %v1593, %v1592
    %v1595 = vrot.slane %v1433, 5
    %v1596 = vsel %vm1470, %v1595, %v1594
    %v1597 = vrot.slane %v1434, 4
    %v1598 = vsel %vm1473, %v1597, %v1596
    %v1599 = vrot.slane %v1435, 3
    %v1600 = vsel %vm1476, %v1599, %v1598
    %v1601 = vrot.slane %v1436, 2
    %v1602 = vsel %vm1479, %v1601, %v1600
    %v1603 = vrot.slane %v1437, 1
    %v1604 = vsel %vm1482, %v1603, %v1602
    %v1605 = vsel %vm304, %v1590, 0
    %v1607 = vsel %vm304, %v1604, 0
    %1609 = vmatprep.subr.mxu0 0.0
    %1610 = vmatpush1.msra.mxu0 %v1438
    %1611 = vmatprep.subr.mxu0 0.0
    %1612 = vmatpush1.msra.mxu0 %v1439
    %1613 = vmatprep.subr.mxu0 0.0
    %1614 = vmatpush1.msra.mxu0 %v1440
    %1615 = vmatprep.subr.mxu0 0.0
    %1616 = vmatpush1.msra.mxu0 %v1441
    %1617 = vmatprep.subr.mxu0 0.0
    %1618 = vmatpush1.msra.mxu0 0.0
    %1619 = vmatprep.subr.mxu0 0.0
    %1620 = vmatpush1.msra.mxu0 0.0
    %1621 = vmatprep.subr.mxu0 0.0
    %1622 = vmatpush1.msra.mxu0 0.0
    %1623 = vmatprep.subr.mxu0 0.0
    %1624 = vmatpush1.msra.mxu0 0.0
    %1625 = vmatprep.subr.mxu0 0.0
    %1626 = vmatpush1.msra.mxu0 0.0
    %1627 = vmatprep.subr.mxu0 0.0
    %1628 = vmatpush1.msra.mxu0 0.0
    %1629 = vmatprep.subr.mxu0 0.0
    %1630 = vmatpush1.msra.mxu0 0.0
    %1631 = vmatprep.subr.mxu0 0.0
    %1632 = vmatpush1.msra.mxu0 0.0
    %1633 = vmatprep.subr.mxu0 0.0
    %1634 = vmatpush1.msra.mxu0 0.0
    %1635 = vmatprep.subr.mxu0 0.0
    %1636 = vmatpush1.msra.mxu0 0.0
    %1637 = vmatprep.subr.mxu0 0.0
    %1638 = vmatpush1.msra.mxu0 0.0
    %1639 = vmatprep.subr.mxu0 0.0
    %1640 = vmatpush1.msra.mxu0 0.0
    %1641 = vmatprep.subr.mxu0 0.0
    %1642 = vmatpush1.msra.mxu0 0.0
    %1643 = vmatprep.subr.mxu0 0.0
    %1644 = vmatpush1.msra.mxu0 0.0
    %1645 = vmatprep.subr.mxu0 0.0
    %1646 = vmatpush1.msra.mxu0 0.0
    %1647 = vmatprep.subr.mxu0 0.0
    %1648 = vmatpush1.msra.mxu0 0.0
    %1649 = vmatprep.subr.mxu0 0.0
    %1650 = vmatpush1.msra.mxu0 0.0
    %1651 = vmatprep.subr.mxu0 0.0
    %1652 = vmatpush1.msra.mxu0 0.0
    %1653 = vmatprep.subr.mxu0 0.0
    %1654 = vmatpush1.msra.mxu0 0.0
    %1655 = vmatprep.subr.mxu0 0.0
    %1656 = vmatpush1.msra.mxu0 0.0
    %1657 = vmatprep.subr.mxu0 0.0
    %1658 = vmatpush1.msra.mxu0 0.0
    %1659 = vmatprep.subr.mxu0 0.0
    %1660 = vmatpush1.msra.mxu0 0.0
    %1661 = vmatprep.subr.mxu0 0.0
    %1662 = vmatpush1.msra.mxu0 0.0
    %1663 = vmatprep.subr.mxu0 0.0
    %1664 = vmatpush1.msra.mxu0 0.0
    %1665 = vmatprep.subr.mxu0 0.0
    %1666 = vmatpush1.msra.mxu0 0.0
    %1667 = vmatprep.subr.mxu0 0.0
    %1668 = vmatpush1.msra.mxu0 0.0
    %1669 = vmatprep.subr.mxu0 0.0
    %1670 = vmatpush1.msra.mxu0 0.0
    %1671 = vmatprep.subr.mxu0 0.0
    %1672 = vmatpush1.msra.mxu0 0.0
    %1673 = vmatprep.mubr.f32.mxu0 0.0
    %1674 = vmatmul.mubr.f32.gmra.mrb[0].mxu0 %v1605
    %v1675 = vpop.f32.mrb[0].mxu0
    %v1676 = vadd.f32 %v1569, %v1675
    %v1677 = vpop.f32.mrb[0].mxu0
    %1678 = vmatprep.mubr.f32.mxu0 0.0
    %1679 = vmatmul.mubr.f32.gmra.mrb[0].mxu0 %v1607
    %v1680 = vpop.f32.mrb[0].mxu0
    %v1681 = vadd.f32 %v1574, %v1680
    %v1682 = vpop.f32.mrb[0].mxu0
    %1683 = vdwg.mxu0
    %s1684 = scalar_lea.vmem %s7, 64
    %v1685 = vld [vmem:[%s1684] sm:$0xff]
    %v1686 = vld [vmem:[%s1684 + $0x8] sm:$0xff]
    %v1687 = vld [vmem:[%s1684 + $0x10] sm:$0xff]
    %v1688 = vld [vmem:[%s1684 + $0x18] sm:$0xff]
    %v1689 = vrot.slane %v1422, 2
    %v1690 = vrot.slane %v1423, 1
    %v1691 = vsel %vm1464, %v1690, %v1689
    %v1692 = vsel %vm1467, %v1424, %v1691
    %v1693 = vrot.slane %v1425, 7
    %v1694 = vsel %vm1470, %v1693, %v1692
    %v1695 = vrot.slane %v1426, 6
    %v1696 = vsel %vm1473, %v1695, %v1694
    %v1697 = vrot.slane %v1427, 5
    %v1698 = vsel %vm1476, %v1697, %v1696
    %v1699 = vrot.slane %v1428, 4
    %v1700 = vsel %vm1479, %v1699, %v1698
    %v1701 = vrot.slane %v1429, 3
    %v1702 = vsel %vm1482, %v1701, %v1700
    %v1703 = vrot.slane %v1430, 2
    %v1704 = vrot.slane %v1431, 1
    %v1705 = vsel %vm1464, %v1704, %v1703
    %v1706 = vsel %vm1467, %v1432, %v1705
    %v1707 = vrot.slane %v1433, 7
    %v1708 = vsel %vm1470, %v1707, %v1706
    %v1709 = vrot.slane %v1434, 6
    %v1710 = vsel %vm1473, %v1709, %v1708
    %v1711 = vrot.slane %v1435, 5
    %v1712 = vsel %vm1476, %v1711, %v1710
    %v1713 = vrot.slane %v1436, 4
    %v1714 = vsel %vm1479, %v1713, %v1712
    %v1715 = vrot.slane %v1437, 3
    %v1716 = vsel %vm1482, %v1715, %v1714
    %v1717 = vsel %vm304, %v1702, 0
    %v1719 = vsel %vm304, %v1716, 0
    %1721 = vmatprep.subr.mxu0 0.0
    %1722 = vmatpush1.msra.mxu0 %v1685
    %1723 = vmatprep.subr.mxu0 0.0
    %1724 = vmatpush1.msra.mxu0 %v1686
    %1725 = vmatprep.subr.mxu0 0.0
    %1726 = vmatpush1.msra.mxu0 %v1687
    %1727 = vmatprep.subr.mxu0 0.0
    %1728 = vmatpush1.msra.mxu0 %v1688
    %1729 = vmatprep.subr.mxu0 0.0
    %1730 = vmatpush1.msra.mxu0 0.0
    %1731 = vmatprep.subr.mxu0 0.0
    %1732 = vmatpush1.msra.mxu0 0.0
    %1733 = vmatprep.subr.mxu0 0.0
    %1734 = vmatpush1.msra.mxu0 0.0
    %1735 = vmatprep.subr.mxu0 0.0
    %1736 = vmatpush1.msra.mxu0 0.0
    %1737 = vmatprep.subr.mxu0 0.0
    %1738 = vmatpush1.msra.mxu0 0.0
    %1739 = vmatprep.subr.mxu0 0.0
    %1740 = vmatpush1.msra.mxu0 0.0
    %1741 = vmatprep.subr.mxu0 0.0
    %1742 = vmatpush1.msra.mxu0 0.0
    %1743 = vmatprep.subr.mxu0 0.0
    %1744 = vmatpush1.msra.mxu0 0.0
    %1745 = vmatprep.subr.mxu0 0.0
    %1746 = vmatpush1.msra.mxu0 0.0
    %1747 = vmatprep.subr.mxu0 0.0
    %1748 = vmatpush1.msra.mxu0 0.0
    %1749 = vmatprep.subr.mxu0 0.0
    %1750 = vmatpush1.msra.mxu0 0.0
    %1751 = vmatprep.subr.mxu0 0.0
    %1752 = vmatpush1.msra.mxu0 0.0
    %1753 = vmatprep.subr.mxu0 0.0
    %1754 = vmatpush1.msra.mxu0 0.0
    %1755 = vmatprep.subr.mxu0 0.0
    %1756 = vmatpush1.msra.mxu0 0.0
    %1757 = vmatprep.subr.mxu0 0.0
    %1758 = vmatpush1.msra.mxu0 0.0
    %1759 = vmatprep.subr.mxu0 0.0
    %1760 = vmatpush1.msra.mxu0 0.0
    %1761 = vmatprep.subr.mxu0 0.0
    %1762 = vmatpush1.msra.mxu0 0.0
    %1763 = vmatprep.subr.mxu0 0.0
    %1764 = vmatpush1.msra.mxu0 0.0
    %1765 = vmatprep.subr.mxu0 0.0
    %1766 = vmatpush1.msra.mxu0 0.0
    %1767 = vmatprep.subr.mxu0 0.0
    %1768 = vmatpush1.msra.mxu0 0.0
    %1769 = vmatprep.subr.mxu0 0.0
    %1770 = vmatpush1.msra.mxu0 0.0
    %1771 = vmatprep.subr.mxu0 0.0
    %1772 = vmatpush1.msra.mxu0 0.0
    %1773 = vmatprep.subr.mxu0 0.0
    %1774 = vmatpush1.msra.mxu0 0.0
    %1775 = vmatprep.subr.mxu0 0.0
    %1776 = vmatpush1.msra.mxu0 0.0
    %1777 = vmatprep.subr.mxu0 0.0
    %1778 = vmatpush1.msra.mxu0 0.0
    %1779 = vmatprep.subr.mxu0 0.0
    %1780 = vmatpush1.msra.mxu0 0.0
    %1781 = vmatprep.subr.mxu0 0.0
    %1782 = vmatpush1.msra.mxu0 0.0
    %1783 = vmatprep.subr.mxu0 0.0
    %1784 = vmatpush1.msra.mxu0 0.0
    %1785 = vmatprep.mubr.f32.mxu0 0.0
    %1786 = vmatmul.mubr.f32.gmra.mrb[0].mxu0 %v1717
    %v1787 = vpop.f32.mrb[0].mxu0
    %v1788 = vadd.f32 0.0, %v1787
    %v1789 = vpop.f32.mrb[0].mxu0
    %1790 = vmatprep.mubr.f32.mxu0 0.0
    %1791 = vmatmul.mubr.f32.gmra.mrb[0].mxu0 %v1719
    %v1792 = vpop.f32.mrb[0].mxu0
    %v1793 = vadd.f32 0.0, %v1792
    %v1794 = vpop.f32.mrb[0].mxu0
    %1795 = vdwg.mxu0
    %v1796 = vadd.f32 %v1676, %v1788
    %v1797 = vadd.f32 %v1681, %v1793
    %s1798 = scalar_lea.vmem %s7, 96
    %v1799 = vld [vmem:[%s1798] sm:$0xff]
    %v1800 = vld [vmem:[%s1798 + $0x8] sm:$0xff]
    %v1801 = vld [vmem:[%s1798 + $0x10] sm:$0xff]
    %v1802 = vld [vmem:[%s1798 + $0x18] sm:$0xff]
    %v1803 = vrot.slane %v1422, 3
    %v1804 = vrot.slane %v1423, 2
    %v1805 = vsel %vm1464, %v1804, %v1803
    %v1806 = vrot.slane %v1424, 1
    %v1807 = vsel %vm1467, %v1806, %v1805
    %v1808 = vsel %vm1470, %v1425, %v1807
    %v1809 = vrot.slane %v1426, 7
    %v1810 = vsel %vm1473, %v1809, %v1808
    %v1811 = vrot.slane %v1427, 6
    %v1812 = vsel %vm1476, %v1811, %v1810
    %v1813 = vrot.slane %v1428, 5
    %v1814 = vsel %vm1479, %v1813, %v1812
    %v1815 = vrot.slane %v1429, 4
    %v1816 = vsel %vm1482, %v1815, %v1814
    %v1817 = vrot.slane %v1430, 3
    %v1818 = vrot.slane %v1431, 2
    %v1819 = vsel %vm1464, %v1818, %v1817
    %v1820 = vrot.slane %v1432, 1
    %v1821 = vsel %vm1467, %v1820, %v1819
    %v1822 = vsel %vm1470, %v1433, %v1821
    %v1823 = vrot.slane %v1434, 7
    %v1824 = vsel %vm1473, %v1823, %v1822
    %v1825 = vrot.slane %v1435, 6
    %v1826 = vsel %vm1476, %v1825, %v1824
    %v1827 = vrot.slane %v1436, 5
    %v1828 = vsel %vm1479, %v1827, %v1826
    %v1829 = vrot.slane %v1437, 4
    %v1830 = vsel %vm1482, %v1829, %v1828
    %v1831 = vsel %vm304, %v1816, 0
    %v1833 = vsel %vm304, %v1830, 0
    %1835 = vmatprep.subr.mxu0 0.0
    %1836 = vmatpush1.msra.mxu0 %v1799
    %1837 = vmatprep.subr.mxu0 0.0
    %1838 = vmatpush1.msra.mxu0 %v1800
    %1839 = vmatprep.subr.mxu0 0.0
    %1840 = vmatpush1.msra.mxu0 %v1801
    %1841 = vmatprep.subr.mxu0 0.0
    %1842 = vmatpush1.msra.mxu0 %v1802
    %1843 = vmatprep.subr.mxu0 0.0
    %1844 = vmatpush1.msra.mxu0 0.0
    %1845 = vmatprep.subr.mxu0 0.0
    %1846 = vmatpush1.msra.mxu0 0.0
    %1847 = vmatprep.subr.mxu0 0.0
    %1848 = vmatpush1.msra.mxu0 0.0
    %1849 = vmatprep.subr.mxu0 0.0
    %1850 = vmatpush1.msra.mxu0 0.0
    %1851 = vmatprep.subr.mxu0 0.0
    %1852 = vmatpush1.msra.mxu0 0.0
    %1853 = vmatprep.subr.mxu0 0.0
    %1854 = vmatpush1.msra.mxu0 0.0
    %1855 = vmatprep.subr.mxu0 0.0
    %1856 = vmatpush1.msra.mxu0 0.0
    %1857 = vmatprep.subr.mxu0 0.0
    %1858 = vmatpush1.msra.mxu0 0.0
    %1859 = vmatprep.subr.mxu0 0.0
    %1860 = vmatpush1.msra.mxu0 0.0
    %1861 = vmatprep.subr.mxu0 0.0
    %1862 = vmatpush1.msra.mxu0 0.0
    %1863 = vmatprep.subr.mxu0 0.0
    %1864 = vmatpush1.msra.mxu0 0.0
    %1865 = vmatprep.subr.mxu0 0.0
    %1866 = vmatpush1.msra.mxu0 0.0
    %1867 = vmatprep.subr.mxu0 0.0
    %1868 = vmatpush1.msra.mxu0 0.0
    %1869 = vmatprep.subr.mxu0 0.0
    %1870 = vmatpush1.msra.mxu0 0.0
    %1871 = vmatprep.subr.mxu0 0.0
    %1872 = vmatpush1.msra.mxu0 0.0
    %1873 = vmatprep.subr.mxu0 0.0
    %1874 = vmatpush1.msra.mxu0 0.0
    %1875 = vmatprep.subr.mxu0 0.0
    %1876 = vmatpush1.msra.mxu0 0.0
    %1877 = vmatprep.subr.mxu0 0.0
    %1878 = vmatpush1.msra.mxu0 0.0
    %1879 = vmatprep.subr.mxu0 0.0
    %1880 = vmatpush1.msra.mxu0 0.0
    %1881 = vmatprep.subr.mxu0 0.0
    %1882 = vmatpush1.msra.mxu0 0.0
    %1883 = vmatprep.subr.mxu0 0.0
    %1884 = vmatpush1.msra.mxu0 0.0
    %1885 = vmatprep.subr.mxu0 0.0
    %1886 = vmatpush1.msra.mxu0 0.0
    %1887 = vmatprep.subr.mxu0 0.0
    %1888 = vmatpush1.msra.mxu0 0.0
    %1889 = vmatprep.subr.mxu0 0.0
    %1890 = vmatpush1.msra.mxu0 0.0
    %1891 = vmatprep.subr.mxu0 0.0
    %1892 = vmatpush1.msra.mxu0 0.0
    %1893 = vmatprep.subr.mxu0 0.0
    %1894 = vmatpush1.msra.mxu0 0.0
    %1895 = vmatprep.subr.mxu0 0.0
    %1896 = vmatpush1.msra.mxu0 0.0
    %1897 = vmatprep.subr.mxu0 0.0
    %1898 = vmatpush1.msra.mxu0 0.0
    %1899 = vmatprep.mubr.f32.mxu0 0.0
    %1900 = vmatmul.mubr.f32.gmra.mrb[0].mxu0 %v1831
    %v1901 = vpop.f32.mrb[0].mxu0
    %v1902 = vadd.f32 0.0, %v1901
    %v1903 = vpop.f32.mrb[0].mxu0
    %1904 = vmatprep.mubr.f32.mxu0 0.0
    %1905 = vmatmul.mubr.f32.gmra.mrb[0].mxu0 %v1833
    %v1906 = vpop.f32.mrb[0].mxu0
    %v1907 = vadd.f32 0.0, %v1906
    %v1908 = vpop.f32.mrb[0].mxu0
    %1909 = vdwg.mxu0
    %v1910 = vadd.f32 %v1796, %v1902
    %v1911 = vadd.f32 %v1797, %v1907
    %s1912 = scalar_lea.vmem %s7, 128
    %v1913 = vld [vmem:[%s1912] sm:$0xff]
    %v1914 = vld [vmem:[%s1912 + $0x8] sm:$0xff]
    %v1915 = vld [vmem:[%s1912 + $0x10] sm:$0xff]
    %v1916 = vld [vmem:[%s1912 + $0x18] sm:$0xff]
    %v1917 = vrot.slane %v1422, 4
    %v1918 = vrot.slane %v1423, 3
    %v1919 = vsel %vm1464, %v1918, %v1917
    %v1920 = vrot.slane %v1424, 2
    %v1921 = vsel %vm1467, %v1920, %v1919
    %v1922 = vrot.slane %v1425, 1
    %v1923 = vsel %vm1470, %v1922, %v1921
    %v1924 = vsel %vm1473, %v1426, %v1923
    %v1925 = vrot.slane %v1427, 7
    %v1926 = vsel %vm1476, %v1925, %v1924
    %v1927 = vrot.slane %v1428, 6
    %v1928 = vsel %vm1479, %v1927, %v1926
    %v1929 = vrot.slane %v1429, 5
    %v1930 = vsel %vm1482, %v1929, %v1928
    %v1931 = vrot.slane %v1430, 4
    %v1932 = vrot.slane %v1431, 3
    %v1933 = vsel %vm1464, %v1932, %v1931
    %v1934 = vrot.slane %v1432, 2
    %v1935 = vsel %vm1467, %v1934, %v1933
    %v1936 = vrot.slane %v1433, 1
    %v1937 = vsel %vm1470, %v1936, %v1935
    %v1938 = vsel %vm1473, %v1434, %v1937
    %v1939 = vrot.slane %v1435, 7
    %v1940 = vsel %vm1476, %v1939, %v1938
    %v1941 = vrot.slane %v1436, 6
    %v1942 = vsel %vm1479, %v1941, %v1940
    %v1943 = vrot.slane %v1437, 5
    %v1944 = vsel %vm1482, %v1943, %v1942
    %v1945 = vsel %vm304, %v1930, 0
    %v1947 = vsel %vm304, %v1944, 0
    %1949 = vmatprep.subr.mxu0 0.0
    %1950 = vmatpush1.msra.mxu0 %v1913
    %1951 = vmatprep.subr.mxu0 0.0
    %1952 = vmatpush1.msra.mxu0 %v1914
    %1953 = vmatprep.subr.mxu0 0.0
    %1954 = vmatpush1.msra.mxu0 %v1915
    %1955 = vmatprep.subr.mxu0 0.0
    %1956 = vmatpush1.msra.mxu0 %v1916
    %1957 = vmatprep.subr.mxu0 0.0
    %1958 = vmatpush1.msra.mxu0 0.0
    %1959 = vmatprep.subr.mxu0 0.0
    %1960 = vmatpush1.msra.mxu0 0.0
    %1961 = vmatprep.subr.mxu0 0.0
    %1962 = vmatpush1.msra.mxu0 0.0
    %1963 = vmatprep.subr.mxu0 0.0
    %1964 = vmatpush1.msra.mxu0 0.0
    %1965 = vmatprep.subr.mxu0 0.0
    %1966 = vmatpush1.msra.mxu0 0.0
    %1967 = vmatprep.subr.mxu0 0.0
    %1968 = vmatpush1.msra.mxu0 0.0
    %1969 = vmatprep.subr.mxu0 0.0
    %1970 = vmatpush1.msra.mxu0 0.0
    %1971 = vmatprep.subr.mxu0 0.0
    %1972 = vmatpush1.msra.mxu0 0.0
    %1973 = vmatprep.subr.mxu0 0.0
    %1974 = vmatpush1.msra.mxu0 0.0
    %1975 = vmatprep.subr.mxu0 0.0
    %1976 = vmatpush1.msra.mxu0 0.0
    %1977 = vmatprep.subr.mxu0 0.0
    %1978 = vmatpush1.msra.mxu0 0.0
    %1979 = vmatprep.subr.mxu0 0.0
    %1980 = vmatpush1.msra.mxu0 0.0
    %1981 = vmatprep.subr.mxu0 0.0
    %1982 = vmatpush1.msra.mxu0 0.0
    %1983 = vmatprep.subr.mxu0 0.0
    %1984 = vmatpush1.msra.mxu0 0.0
    %1985 = vmatprep.subr.mxu0 0.0
    %1986 = vmatpush1.msra.mxu0 0.0
    %1987 = vmatprep.subr.mxu0 0.0
    %1988 = vmatpush1.msra.mxu0 0.0
    %1989 = vmatprep.subr.mxu0 0.0
    %1990 = vmatpush1.msra.mxu0 0.0
    %1991 = vmatprep.subr.mxu0 0.0
    %1992 = vmatpush1.msra.mxu0 0.0
    %1993 = vmatprep.subr.mxu0 0.0
    %1994 = vmatpush1.msra.mxu0 0.0
    %1995 = vmatprep.subr.mxu0 0.0
    %1996 = vmatpush1.msra.mxu0 0.0
    %1997 = vmatprep.subr.mxu0 0.0
    %1998 = vmatpush1.msra.mxu0 0.0
    %1999 = vmatprep.subr.mxu0 0.0
    %2000 = vmatpush1.msra.mxu0 0.0
    %2001 = vmatprep.subr.mxu0 0.0
    %2002 = vmatpush1.msra.mxu0 0.0
    %2003 = vmatprep.subr.mxu0 0.0
    %2004 = vmatpush1.msra.mxu0 0.0
    %2005 = vmatprep.subr.mxu0 0.0
    %2006 = vmatpush1.msra.mxu0 0.0
    %2007 = vmatprep.subr.mxu0 0.0
    %2008 = vmatpush1.msra.mxu0 0.0
    %2009 = vmatprep.subr.mxu0 0.0
    %2010 = vmatpush1.msra.mxu0 0.0
    %2011 = vmatprep.subr.mxu0 0.0
    %2012 = vmatpush1.msra.mxu0 0.0
    %2013 = vmatprep.mubr.f32.mxu0 0.0
    %2014 = vmatmul.mubr.f32.gmra.mrb[0].mxu0 %v1945
    %v2015 = vpop.f32.mrb[0].mxu0
    %v2016 = vadd.f32 0.0, %v2015
    %v2017 = vpop.f32.mrb[0].mxu0
    %2018 = vmatprep.mubr.f32.mxu0 0.0
    %2019 = vmatmul.mubr.f32.gmra.mrb[0].mxu0 %v1947
    %v2020 = vpop.f32.mrb[0].mxu0
    %v2021 = vadd.f32 0.0, %v2020
    %v2022 = vpop.f32.mrb[0].mxu0
    %2023 = vdwg.mxu0
    %v2024 = vadd.f32 %v1910, %v2016
    %v2025 = vadd.f32 %v1911, %v2021
    %s2026 = scalar_lea.vmem %s7, 160
    %v2027 = vld [vmem:[%s2026] sm:$0xff]
    %v2028 = vld [vmem:[%s2026 + $0x8] sm:$0xff]
    %v2029 = vld [vmem:[%s2026 + $0x10] sm:$0xff]
    %v2030 = vld [vmem:[%s2026 + $0x18] sm:$0xff]
    %v2031 = vrot.slane %v1422, 5
    %v2032 = vrot.slane %v1423, 4
    %v2033 = vsel %vm1464, %v2032, %v2031
    %v2034 = vrot.slane %v1424, 3
    %v2035 = vsel %vm1467, %v2034, %v2033
    %v2036 = vrot.slane %v1425, 2
    %v2037 = vsel %vm1470, %v2036, %v2035
    %v2038 = vrot.slane %v1426, 1
    %v2039 = vsel %vm1473, %v2038, %v2037
    %v2040 = vsel %vm1476, %v1427, %v2039
    %v2041 = vrot.slane %v1428, 7
    %v2042 = vsel %vm1479, %v2041, %v2040
    %v2043 = vrot.slane %v1429, 6
    %v2044 = vsel %vm1482, %v2043, %v2042
    %v2045 = vrot.slane %v1430, 5
    %v2046 = vrot.slane %v1431, 4
    %v2047 = vsel %vm1464, %v2046, %v2045
    %v2048 = vrot.slane %v1432, 3
    %v2049 = vsel %vm1467, %v2048, %v2047
    %v2050 = vrot.slane %v1433, 2
    %v2051 = vsel %vm1470, %v2050, %v2049
    %v2052 = vrot.slane %v1434, 1
    %v2053 = vsel %vm1473, %v2052, %v2051
    %v2054 = vsel %vm1476, %v1435, %v2053
    %v2055 = vrot.slane %v1436, 7
    %v2056 = vsel %vm1479, %v2055, %v2054
    %v2057 = vrot.slane %v1437, 6
    %v2058 = vsel %vm1482, %v2057, %v2056
    %v2059 = vsel %vm304, %v2044, 0
    %v2061 = vsel %vm304, %v2058, 0
    %2063 = vmatprep.subr.mxu0 0.0
    %2064 = vmatpush1.msra.mxu0 %v2027
    %2065 = vmatprep.subr.mxu0 0.0
    %2066 = vmatpush1.msra.mxu0 %v2028
    %2067 = vmatprep.subr.mxu0 0.0
    %2068 = vmatpush1.msra.mxu0 %v2029
    %2069 = vmatprep.subr.mxu0 0.0
    %2070 = vmatpush1.msra.mxu0 %v2030
    %2071 = vmatprep.subr.mxu0 0.0
    %2072 = vmatpush1.msra.mxu0 0.0
    %2073 = vmatprep.subr.mxu0 0.0
    %2074 = vmatpush1.msra.mxu0 0.0
    %2075 = vmatprep.subr.mxu0 0.0
    %2076 = vmatpush1.msra.mxu0 0.0
    %2077 = vmatprep.subr.mxu0 0.0
    %2078 = vmatpush1.msra.mxu0 0.0
    %2079 = vmatprep.subr.mxu0 0.0
    %2080 = vmatpush1.msra.mxu0 0.0
    %2081 = vmatprep.subr.mxu0 0.0
    %2082 = vmatpush1.msra.mxu0 0.0
    %2083 = vmatprep.subr.mxu0 0.0
    %2084 = vmatpush1.msra.mxu0 0.0
    %2085 = vmatprep.subr.mxu0 0.0
    %2086 = vmatpush1.msra.mxu0 0.0
    %2087 = vmatprep.subr.mxu0 0.0
    %2088 = vmatpush1.msra.mxu0 0.0
    %2089 = vmatprep.subr.mxu0 0.0
    %2090 = vmatpush1.msra.mxu0 0.0
    %2091 = vmatprep.subr.mxu0 0.0
    %2092 = vmatpush1.msra.mxu0 0.0
    %2093 = vmatprep.subr.mxu0 0.0
    %2094 = vmatpush1.msra.mxu0 0.0
    %2095 = vmatprep.subr.mxu0 0.0
    %2096 = vmatpush1.msra.mxu0 0.0
    %2097 = vmatprep.subr.mxu0 0.0
    %2098 = vmatpush1.msra.mxu0 0.0
    %2099 = vmatprep.subr.mxu0 0.0
    %2100 = vmatpush1.msra.mxu0 0.0
    %2101 = vmatprep.subr.mxu0 0.0
    %2102 = vmatpush1.msra.mxu0 0.0
    %2103 = vmatprep.subr.mxu0 0.0
    %2104 = vmatpush1.msra.mxu0 0.0
    %2105 = vmatprep.subr.mxu0 0.0
    %2106 = vmatpush1.msra.mxu0 0.0
    %2107 = vmatprep.subr.mxu0 0.0
    %2108 = vmatpush1.msra.mxu0 0.0
    %2109 = vmatprep.subr.mxu0 0.0
    %2110 = vmatpush1.msra.mxu0 0.0
    %2111 = vmatprep.subr.mxu0 0.0
    %2112 = vmatpush1.msra.mxu0 0.0
    %2113 = vmatprep.subr.mxu0 0.0
    %2114 = vmatpush1.msra.mxu0 0.0
    %2115 = vmatprep.subr.mxu0 0.0
    %2116 = vmatpush1.msra.mxu0 0.0
    %2117 = vmatprep.subr.mxu0 0.0
    %2118 = vmatpush1.msra.mxu0 0.0
    %2119 = vmatprep.subr.mxu0 0.0
    %2120 = vmatpush1.msra.mxu0 0.0
    %2121 = vmatprep.subr.mxu0 0.0
    %2122 = vmatpush1.msra.mxu0 0.0
    %2123 = vmatprep.subr.mxu0 0.0
    %2124 = vmatpush1.msra.mxu0 0.0
    %2125 = vmatprep.subr.mxu0 0.0
    %2126 = vmatpush1.msra.mxu0 0.0
    %2127 = vmatprep.mubr.f32.mxu0 0.0
    %2128 = vmatmul.mubr.f32.gmra.mrb[0].mxu0 %v2059
    %v2129 = vpop.f32.mrb[0].mxu0
    %v2130 = vadd.f32 0.0, %v2129
    %v2131 = vpop.f32.mrb[0].mxu0
    %2132 = vmatprep.mubr.f32.mxu0 0.0
    %2133 = vmatmul.mubr.f32.gmra.mrb[0].mxu0 %v2061
    %v2134 = vpop.f32.mrb[0].mxu0
    %v2135 = vadd.f32 0.0, %v2134
    %v2136 = vpop.f32.mrb[0].mxu0
    %2137 = vdwg.mxu0
    %v2138 = vadd.f32 %v2024, %v2130
    %v2139 = vadd.f32 %v2025, %v2135
    %s2140 = scalar_lea.vmem %s7, 192
    %v2141 = vld [vmem:[%s2140] sm:$0xff]
    %v2142 = vld [vmem:[%s2140 + $0x8] sm:$0xff]
    %v2143 = vld [vmem:[%s2140 + $0x10] sm:$0xff]
    %v2144 = vld [vmem:[%s2140 + $0x18] sm:$0xff]
    %v2145 = vrot.slane %v1422, 6
    %v2146 = vrot.slane %v1423, 5
    %v2147 = vsel %vm1464, %v2146, %v2145
    %v2148 = vrot.slane %v1424, 4
    %v2149 = vsel %vm1467, %v2148, %v2147
    %v2150 = vrot.slane %v1425, 3
    %v2151 = vsel %vm1470, %v2150, %v2149
    %v2152 = vrot.slane %v1426, 2
    %v2153 = vsel %vm1473, %v2152, %v2151
    %v2154 = vrot.slane %v1427, 1
    %v2155 = vsel %vm1476, %v2154, %v2153
    %v2156 = vsel %vm1479, %v1428, %v2155
    %v2157 = vrot.slane %v1429, 7
    %v2158 = vsel %vm1482, %v2157, %v2156
    %v2159 = vrot.slane %v1430, 6
    %v2160 = vrot.slane %v1431, 5
    %v2161 = vsel %vm1464, %v2160, %v2159
    %v2162 = vrot.slane %v1432, 4
    %v2163 = vsel %vm1467, %v2162, %v2161
    %v2164 = vrot.slane %v1433, 3
    %v2165 = vsel %vm1470, %v2164, %v2163
    %v2166 = vrot.slane %v1434, 2
    %v2167 = vsel %vm1473, %v2166, %v2165
    %v2168 = vrot.slane %v1435, 1
    %v2169 = vsel %vm1476, %v2168, %v2167
    %v2170 = vsel %vm1479, %v1436, %v2169
    %v2171 = vrot.slane %v1437, 7
    %v2172 = vsel %vm1482, %v2171, %v2170
    %v2173 = vsel %vm304, %v2158, 0
    %v2175 = vsel %vm304, %v2172, 0
    %2177 = vmatprep.subr.mxu0 0.0
    %2178 = vmatpush1.msra.mxu0 %v2141
    %2179 = vmatprep.subr.mxu0 0.0
    %2180 = vmatpush1.msra.mxu0 %v2142
    %2181 = vmatprep.subr.mxu0 0.0
    %2182 = vmatpush1.msra.mxu0 %v2143
    %2183 = vmatprep.subr.mxu0 0.0
    %2184 = vmatpush1.msra.mxu0 %v2144
    %2185 = vmatprep.subr.mxu0 0.0
    %2186 = vmatpush1.msra.mxu0 0.0
    %2187 = vmatprep.subr.mxu0 0.0
    %2188 = vmatpush1.msra.mxu0 0.0
    %2189 = vmatprep.subr.mxu0 0.0
    %2190 = vmatpush1.msra.mxu0 0.0
    %2191 = vmatprep.subr.mxu0 0.0
    %2192 = vmatpush1.msra.mxu0 0.0
    %2193 = vmatprep.subr.mxu0 0.0
    %2194 = vmatpush1.msra.mxu0 0.0
    %2195 = vmatprep.subr.mxu0 0.0
    %2196 = vmatpush1.msra.mxu0 0.0
    %2197 = vmatprep.subr.mxu0 0.0
    %2198 = vmatpush1.msra.mxu0 0.0
    %2199 = vmatprep.subr.mxu0 0.0
    %2200 = vmatpush1.msra.mxu0 0.0
    %2201 = vmatprep.subr.mxu0 0.0
    %2202 = vmatpush1.msra.mxu0 0.0
    %2203 = vmatprep.subr.mxu0 0.0
    %2204 = vmatpush1.msra.mxu0 0.0
    %2205 = vmatprep.subr.mxu0 0.0
    %2206 = vmatpush1.msra.mxu0 0.0
    %2207 = vmatprep.subr.mxu0 0.0
    %2208 = vmatpush1.msra.mxu0 0.0
    %2209 = vmatprep.subr.mxu0 0.0
    %2210 = vmatpush1.msra.mxu0 0.0
    %2211 = vmatprep.subr.mxu0 0.0
    %2212 = vmatpush1.msra.mxu0 0.0
    %2213 = vmatprep.subr.mxu0 0.0
    %2214 = vmatpush1.msra.mxu0 0.0
    %2215 = vmatprep.subr.mxu0 0.0
    %2216 = vmatpush1.msra.mxu0 0.0
    %2217 = vmatprep.subr.mxu0 0.0
    %2218 = vmatpush1.msra.mxu0 0.0
    %2219 = vmatprep.subr.mxu0 0.0
    %2220 = vmatpush1.msra.mxu0 0.0
    %2221 = vmatprep.subr.mxu0 0.0
    %2222 = vmatpush1.msra.mxu0 0.0
    %2223 = vmatprep.subr.mxu0 0.0
    %2224 = vmatpush1.msra.mxu0 0.0
    %2225 = vmatprep.subr.mxu0 0.0
    %2226 = vmatpush1.msra.mxu0 0.0
    %2227 = vmatprep.subr.mxu0 0.0
    %2228 = vmatpush1.msra.mxu0 0.0
    %2229 = vmatprep.subr.mxu0 0.0
    %2230 = vmatpush1.msra.mxu0 0.0
    %2231 = vmatprep.subr.mxu0 0.0
    %2232 = vmatpush1.msra.mxu0 0.0
    %2233 = vmatprep.subr.mxu0 0.0
    %2234 = vmatpush1.msra.mxu0 0.0
    %2235 = vmatprep.subr.mxu0 0.0
    %2236 = vmatpush1.msra.mxu0 0.0
    %2237 = vmatprep.subr.mxu0 0.0
    %2238 = vmatpush1.msra.mxu0 0.0
    %2239 = vmatprep.subr.mxu0 0.0
    %2240 = vmatpush1.msra.mxu0 0.0
    %2241 = vmatprep.mubr.f32.mxu0 0.0
    %2242 = vmatmul.mubr.f32.gmra.mrb[0].mxu0 %v2173
    %v2243 = vpop.f32.mrb[0].mxu0
    %v2244 = vadd.f32 0.0, %v2243
    %v2245 = vpop.f32.mrb[0].mxu0
    %2246 = vmatprep.mubr.f32.mxu0 0.0
    %2247 = vmatmul.mubr.f32.gmra.mrb[0].mxu0 %v2175
    %v2248 = vpop.f32.mrb[0].mxu0
    %v2249 = vadd.f32 0.0, %v2248
    %v2250 = vpop.f32.mrb[0].mxu0
    %2251 = vdwg.mxu0
    %v2252 = vadd.f32 %v2138, %v2244
    %v2253 = vadd.f32 %v2139, %v2249
    %s2254 = scalar_lea.vmem %s7, 224
    %v2255 = vld [vmem:[%s2254] sm:$0xff]
    %v2256 = vld [vmem:[%s2254 + $0x8] sm:$0xff]
    %v2257 = vld [vmem:[%s2254 + $0x10] sm:$0xff]
    %v2258 = vld [vmem:[%s2254 + $0x18] sm:$0xff]
    %v2259 = vrot.slane %v1422, 7
    %v2260 = vrot.slane %v1423, 6
    %v2261 = vsel %vm1464, %v2260, %v2259
    %v2262 = vrot.slane %v1424, 5
    %v2263 = vsel %vm1467, %v2262, %v2261
    %v2264 = vrot.slane %v1425, 4
    %v2265 = vsel %vm1470, %v2264, %v2263
    %v2266 = vrot.slane %v1426, 3
    %v2267 = vsel %vm1473, %v2266, %v2265
    %v2268 = vrot.slane %v1427, 2
    %v2269 = vsel %vm1476, %v2268, %v2267
    %v2270 = vrot.slane %v1428, 1
    %v2271 = vsel %vm1479, %v2270, %v2269
    %v2272 = vsel %vm1482, %v1429, %v2271
    %v2273 = vrot.slane %v1430, 7
    %v2274 = vrot.slane %v1431, 6
    %v2275 = vsel %vm1464, %v2274, %v2273
    %v2276 = vrot.slane %v1432, 5
    %v2277 = vsel %vm1467, %v2276, %v2275
    %v2278 = vrot.slane %v1433, 4
    %v2279 = vsel %vm1470, %v2278, %v2277
    %v2280 = vrot.slane %v1434, 3
    %v2281 = vsel %vm1473, %v2280, %v2279
    %v2282 = vrot.slane %v1435, 2
    %v2283 = vsel %vm1476, %v2282, %v2281
    %v2284 = vrot.slane %v1436, 1
    %v2285 = vsel %vm1479, %v2284, %v2283
    %v2286 = vsel %vm1482, %v1437, %v2285
    %v2287 = vsel %vm304, %v2272, 0
    %v2289 = vsel %vm304, %v2286, 0
    %2291 = vmatprep.subr.mxu0 0.0
    %2292 = vmatpush1.msra.mxu0 %v2255
    %2293 = vmatprep.subr.mxu0 0.0
    %2294 = vmatpush1.msra.mxu0 %v2256
    %2295 = vmatprep.subr.mxu0 0.0
    %2296 = vmatpush1.msra.mxu0 %v2257
    %2297 = vmatprep.subr.mxu0 0.0
    %2298 = vmatpush1.msra.mxu0 %v2258
    %2299 = vmatprep.subr.mxu0 0.0
    %2300 = vmatpush1.msra.mxu0 0.0
    %2301 = vmatprep.subr.mxu0 0.0
    %2302 = vmatpush1.msra.mxu0 0.0
    %2303 = vmatprep.subr.mxu0 0.0
    %2304 = vmatpush1.msra.mxu0 0.0
    %2305 = vmatprep.subr.mxu0 0.0
    %2306 = vmatpush1.msra.mxu0 0.0
    %2307 = vmatprep.subr.mxu0 0.0
    %2308 = vmatpush1.msra.mxu0 0.0
    %2309 = vmatprep.subr.mxu0 0.0
    %2310 = vmatpush1.msra.mxu0 0.0
    %2311 = vmatprep.subr.mxu0 0.0
    %2312 = vmatpush1.msra.mxu0 0.0
    %2313 = vmatprep.subr.mxu0 0.0
    %2314 = vmatpush1.msra.mxu0 0.0
    %2315 = vmatprep.subr.mxu0 0.0
    %2316 = vmatpush1.msra.mxu0 0.0
    %2317 = vmatprep.subr.mxu0 0.0
    %2318 = vmatpush1.msra.mxu0 0.0
    %2319 = vmatprep.subr.mxu0 0.0
    %2320 = vmatpush1.msra.mxu0 0.0
    %2321 = vmatprep.subr.mxu0 0.0
    %2322 = vmatpush1.msra.mxu0 0.0
    %2323 = vmatprep.subr.mxu0 0.0
    %2324 = vmatpush1.msra.mxu0 0.0
    %2325 = vmatprep.subr.mxu0 0.0
    %2326 = vmatpush1.msra.mxu0 0.0
    %2327 = vmatprep.subr.mxu0 0.0
    %2328 = vmatpush1.msra.mxu0 0.0
    %2329 = vmatprep.subr.mxu0 0.0
    %2330 = vmatpush1.msra.mxu0 0.0
    %2331 = vmatprep.subr.mxu0 0.0
    %2332 = vmatpush1.msra.mxu0 0.0
    %2333 = vmatprep.subr.mxu0 0.0
    %2334 = vmatpush1.msra.mxu0 0.0
    %2335 = vmatprep.subr.mxu0 0.0
    %2336 = vmatpush1.msra.mxu0 0.0
    %2337 = vmatprep.subr.mxu0 0.0
    %2338 = vmatpush1.msra.mxu0 0.0
    %2339 = vmatprep.subr.mxu0 0.0
    %2340 = vmatpush1.msra.mxu0 0.0
    %2341 = vmatprep.subr.mxu0 0.0
    %2342 = vmatpush1.msra.mxu0 0.0
    %2343 = vmatprep.subr.mxu0 0.0
    %2344 = vmatpush1.msra.mxu0 0.0
    %2345 = vmatprep.subr.mxu0 0.0
    %2346 = vmatpush1.msra.mxu0 0.0
    %2347 = vmatprep.subr.mxu0 0.0
    %2348 = vmatpush1.msra.mxu0 0.0
    %2349 = vmatprep.subr.mxu0 0.0
    %2350 = vmatpush1.msra.mxu0 0.0
    %2351 = vmatprep.subr.mxu0 0.0
    %2352 = vmatpush1.msra.mxu0 0.0
    %2353 = vmatprep.subr.mxu0 0.0
    %2354 = vmatpush1.msra.mxu0 0.0
    %2355 = vmatprep.mubr.f32.mxu0 0.0
    %2356 = vmatmul.mubr.f32.gmra.mrb[0].mxu0 %v2287
    %v2357 = vpop.f32.mrb[0].mxu0
    %v2358 = vadd.f32 0.0, %v2357
    %v2359 = vpop.f32.mrb[0].mxu0
    %2360 = vmatprep.mubr.f32.mxu0 0.0
    %2361 = vmatmul.mubr.f32.gmra.mrb[0].mxu0 %v2289
    %v2362 = vpop.f32.mrb[0].mxu0
    %v2363 = vadd.f32 0.0, %v2362
    %v2364 = vpop.f32.mrb[0].mxu0
    %2365 = vdwg.mxu0
    %v2366 = vadd.f32 %v2252, %v2358
    %v2367 = vadd.f32 %v2253, %v2363
    %v2368 = vld [vmem:[%s8] sm:$0x1]
    %v2370 = vlaneseq
    %v2371 = vshrl.u32 %v2370, 7
    %v2372 = vsub.s32 0, %v2371
    %v2373 = vrot.slane %v2368, %v2372
    %v2375 = vadd.f32 %v2366, %v2373
    %v2376 = vadd.f32 %v2367, %v2373
    %vm2377 = vcmask 64512
    %v2378 = vsel %vm2377, %v2375, -inf
    %2379 = vmax.xlane.f32.xlu0 %v2378
    %v2380 = vpop.xlane.xlu0 %2379
    %v2381 = vsel %vm2377, %v2376, -inf
    %2382 = vmax.xlane.f32.xlu0 %v2381
    %v2383 = vpop.xlane.xlu0 %2382
    %v2384 = vsub.f32 %v2375, %v2380
    %v2385 = vsub.f32 %v2376, %v2383
    %v2386 = vmul.f32 %v2384, 1.442695
    %v2387 = vpow.pop %v2386
    %v2388 = vmul.f32 %v2385, 1.442695
    %v2389 = vpow.pop %v2388
    %v2390 = vsel %vm2377, %v2387, 0.0
    %2391 = vadd.xlane.f32.xlu0 %v2390
    %v2392 = vpop.xlane.xlu0 %2391
    %v2393 = vsel %vm2377, %v2389, 0.0
    %2394 = vadd.xlane.f32.xlu0 %v2393
    %v2395 = vpop.xlane.xlu0 %2394
    %v2396 = vrcp.pop %v2392
    %v2397 = vrcp.pop %v2395
    %v2398 = vmul.f32 %v2387, %v2396
    %v2399 = vmul.f32 %v2389, %v2397
    %2401 = vset.pattern.permute.xlu0 0
    %2402 = vperm.xlu0 %2401, %v2398
    %v2403 = vpop.permute.xlu0 %2402
    %2405 = vset.pattern.permute.xlu0 0
    %2406 = vperm.xlu0 %2405, %v2399
    %v2407 = vpop.permute.xlu0 %2406
    %v2408 = vrot.slane %v2403, 1
    %v2409 = vrot.slane %v2403, 2
    %v2410 = vrot.slane %v2403, 3
    %v2411 = vrot.slane %v2403, 4
    %v2412 = vrot.slane %v2403, 5
    %v2413 = vrot.slane %v2403, 6
    %v2414 = vrot.slane %v2403, 7
    %v2415 = vrot.slane %v2407, 1
    %v2416 = vrot.slane %v2407, 2
    %v2417 = vrot.slane %v2407, 3
    %v2418 = vrot.slane %v2407, 4
    %v2419 = vrot.slane %v2407, 5
    %v2420 = vrot.slane %v2407, 6
    %v2421 = vrot.slane %v2407, 7
    %v2438 = vmul.f32 %v1422, %v2403
    %v2439 = vmul.f32 %v1423, %v2408
    %v2440 = vmul.f32 %v1424, %v2409
    %v2441 = vmul.f32 %v1425, %v2410
    %v2442 = vmul.f32 %v1426, %v2411
    %v2443 = vmul.f32 %v1427, %v2412
    %v2444 = vmul.f32 %v1428, %v2413
    %v2445 = vmul.f32 %v1429, %v2414
    %v2446 = vmul.f32 %v1430, %v2407
    %v2447 = vmul.f32 %v1431, %v2415
    %v2448 = vmul.f32 %v1432, %v2416
    %v2449 = vmul.f32 %v1433, %v2417
    %v2450 = vmul.f32 %v1434, %v2418
    %v2451 = vmul.f32 %v1435, %v2419
    %v2452 = vmul.f32 %v1436, %v2420
    %v2453 = vmul.f32 %v1437, %v2421
    %v2454 = vadd.f32 %v2438, 0.0
    %v2455 = vadd.f32 %v2439, 0.0
    %v2456 = vadd.f32 %v2440, 0.0
    %v2457 = vadd.f32 %v2441, 0.0
    %v2458 = vadd.f32 %v2442, 0.0
    %v2459 = vadd.f32 %v2443, 0.0
    %v2460 = vadd.f32 %v2444, 0.0
    %v2461 = vadd.f32 %v2445, 0.0
    %v2462 = vadd.f32 %v2446, 0.0
    %v2463 = vadd.f32 %v2447, 0.0
    %v2464 = vadd.f32 %v2448, 0.0
    %v2465 = vadd.f32 %v2449, 0.0
    %v2466 = vadd.f32 %v2450, 0.0
    %v2467 = vadd.f32 %v2451, 0.0
    %v2468 = vadd.f32 %v2452, 0.0
    %v2469 = vadd.f32 %v2453, 0.0
    %2470 = vset.pattern.permute.xlu0 1
    %2471 = vperm.xlu0 %2470, %v2398
    %v2472 = vpop.permute.xlu0 %2471
    %2473 = vset.pattern.permute.xlu0 1
    %2474 = vperm.xlu0 %2473, %v2399
    %v2475 = vpop.permute.xlu0 %2474
    %v2476 = vrot.slane %v2472, 7
    %v2477 = vrot.slane %v2472, 1
    %v2478 = vrot.slane %v2472, 2
    %v2479 = vrot.slane %v2472, 3
    %v2480 = vrot.slane %v2472, 4
    %v2481 = vrot.slane %v2472, 5
    %v2482 = vrot.slane %v2472, 6
    %v2483 = vrot.slane %v2475, 7
    %v2484 = vrot.slane %v2475, 1
    %v2485 = vrot.slane %v2475, 2
    %v2486 = vrot.slane %v2475, 3
    %v2487 = vrot.slane %v2475, 4
    %v2488 = vrot.slane %v2475, 5
    %v2489 = vrot.slane %v2475, 6
    %v2506 = vmul.f32 %v1422, %v2476
    %v2507 = vmul.f32 %v1423, %v2472
    %v2508 = vmul.f32 %v1424, %v2477
    %v2509 = vmul.f32 %v1425, %v2478
    %v2510 = vmul.f32 %v1426, %v2479
    %v2511 = vmul.f32 %v1427, %v2480
    %v2512 = vmul.f32 %v1428, %v2481
    %v2513 = vmul.f32 %v1429, %v2482
    %v2514 = vmul.f32 %v1430, %v2483
    %v2515 = vmul.f32 %v1431, %v2475
    %v2516 = vmul.f32 %v1432, %v2484
    %v2517 = vmul.f32 %v1433, %v2485
    %v2518 = vmul.f32 %v1434, %v2486
    %v2519 = vmul.f32 %v1435, %v2487
    %v2520 = vmul.f32 %v1436, %v2488
    %v2521 = vmul.f32 %v1437, %v2489
    %v2538 = vrot.slane %v2506, 1
    %v2539 = vrot.slane %v2507, 1
    %v2540 = vrot.slane %v2508, 1
    %v2541 = vrot.slane %v2509, 1
    %v2542 = vrot.slane %v2510, 1
    %v2543 = vrot.slane %v2511, 1
    %v2544 = vrot.slane %v2512, 1
    %v2545 = vrot.slane %v2513, 1
    %v2546 = vrot.slane %v2514, 1
    %v2547 = vrot.slane %v2515, 1
    %v2548 = vrot.slane %v2516, 1
    %v2549 = vrot.slane %v2517, 1
    %v2550 = vrot.slane %v2518, 1
    %v2551 = vrot.slane %v2519, 1
    %v2552 = vrot.slane %v2520, 1
    %v2553 = vrot.slane %v2521, 1
    %v2570 = vadd.f32 %v2454, %v2538
    %v2571 = vadd.f32 %v2455, %v2539
    %v2572 = vadd.f32 %v2456, %v2540
    %v2573 = vadd.f32 %v2457, %v2541
    %v2574 = vadd.f32 %v2458, %v2542
    %v2575 = vadd.f32 %v2459, %v2543
    %v2576 = vadd.f32 %v2460, %v2544
    %v2577 = vadd.f32 %v2461, %v2545
    %v2578 = vadd.f32 %v2462, %v2546
    %v2579 = vadd.f32 %v2463, %v2547
    %v2580 = vadd.f32 %v2464, %v2548
    %v2581 = vadd.f32 %v2465, %v2549
    %v2582 = vadd.f32 %v2466, %v2550
    %v2583 = vadd.f32 %v2467, %v2551
    %v2584 = vadd.f32 %v2468, %v2552
    %v2585 = vadd.f32 %v2469, %v2553
    %2586 = vset.pattern.permute.xlu0 2
    %2587 = vperm.xlu0 %2586, %v2398
    %v2588 = vpop.permute.xlu0 %2587
    %2589 = vset.pattern.permute.xlu0 2
    %2590 = vperm.xlu0 %2589, %v2399
    %v2591 = vpop.permute.xlu0 %2590
    %v2592 = vrot.slane %v2588, 6
    %v2593 = vrot.slane %v2588, 7
    %v2594 = vrot.slane %v2588, 1
    %v2595 = vrot.slane %v2588, 2
    %v2596 = vrot.slane %v2588, 3
    %v2597 = vrot.slane %v2588, 4
    %v2598 = vrot.slane %v2588, 5
    %v2599 = vrot.slane %v2591, 6
    %v2600 = vrot.slane %v2591, 7
    %v2601 = vrot.slane %v2591, 1
    %v2602 = vrot.slane %v2591, 2
    %v2603 = vrot.slane %v2591, 3
    %v2604 = vrot.slane %v2591, 4
    %v2605 = vrot.slane %v2591, 5
    %v2622 = vmul.f32 %v1422, %v2592
    %v2623 = vmul.f32 %v1423, %v2593
    %v2624 = vmul.f32 %v1424, %v2588
    %v2625 = vmul.f32 %v1425, %v2594
    %v2626 = vmul.f32 %v1426, %v2595
    %v2627 = vmul.f32 %v1427, %v2596
    %v2628 = vmul.f32 %v1428, %v2597
    %v2629 = vmul.f32 %v1429, %v2598
    %v2630 = vmul.f32 %v1430, %v2599
    %v2631 = vmul.f32 %v1431, %v2600
    %v2632 = vmul.f32 %v1432, %v2591
    %v2633 = vmul.f32 %v1433, %v2601
    %v2634 = vmul.f32 %v1434, %v2602
    %v2635 = vmul.f32 %v1435, %v2603
    %v2636 = vmul.f32 %v1436, %v2604
    %v2637 = vmul.f32 %v1437, %v2605
    %v2654 = vrot.slane %v2622, 2
    %v2655 = vrot.slane %v2623, 2
    %v2656 = vrot.slane %v2624, 2
    %v2657 = vrot.slane %v2625, 2
    %v2658 = vrot.slane %v2626, 2
    %v2659 = vrot.slane %v2627, 2
    %v2660 = vrot.slane %v2628, 2
    %v2661 = vrot.slane %v2629, 2
    %v2662 = vrot.slane %v2630, 2
    %v2663 = vrot.slane %v2631, 2
    %v2664 = vrot.slane %v2632, 2
    %v2665 = vrot.slane %v2633, 2
    %v2666 = vrot.slane %v2634, 2
    %v2667 = vrot.slane %v2635, 2
    %v2668 = vrot.slane %v2636, 2
    %v2669 = vrot.slane %v2637, 2
    %v2686 = vadd.f32 %v2570, %v2654
    %v2687 = vadd.f32 %v2571, %v2655
    %v2688 = vadd.f32 %v2572, %v2656
    %v2689 = vadd.f32 %v2573, %v2657
    %v2690 = vadd.f32 %v2574, %v2658
    %v2691 = vadd.f32 %v2575, %v2659
    %v2692 = vadd.f32 %v2576, %v2660
    %v2693 = vadd.f32 %v2577, %v2661
    %v2694 = vadd.f32 %v2578, %v2662
    %v2695 = vadd.f32 %v2579, %v2663
    %v2696 = vadd.f32 %v2580, %v2664
    %v2697 = vadd.f32 %v2581, %v2665
    %v2698 = vadd.f32 %v2582, %v2666
    %v2699 = vadd.f32 %v2583, %v2667
    %v2700 = vadd.f32 %v2584, %v2668
    %v2701 = vadd.f32 %v2585, %v2669
    %2702 = vset.pattern.permute.xlu0 3
    %2703 = vperm.xlu0 %2702, %v2398
    %v2704 = vpop.permute.xlu0 %2703
    %2705 = vset.pattern.permute.xlu0 3
    %2706 = vperm.xlu0 %2705, %v2399
    %v2707 = vpop.permute.xlu0 %2706
    %v2708 = vrot.slane %v2704, 5
    %v2709 = vrot.slane %v2704, 6
    %v2710 = vrot.slane %v2704, 7
    %v2711 = vrot.slane %v2704, 1
    %v2712 = vrot.slane %v2704, 2
    %v2713 = vrot.slane %v2704, 3
    %v2714 = vrot.slane %v2704, 4
    %v2715 = vrot.slane %v2707, 5
    %v2716 = vrot.slane %v2707, 6
    %v2717 = vrot.slane %v2707, 7
    %v2718 = vrot.slane %v2707, 1
    %v2719 = vrot.slane %v2707, 2
    %v2720 = vrot.slane %v2707, 3
    %v2721 = vrot.slane %v2707, 4
    %v2738 = vmul.f32 %v1422, %v2708
    %v2739 = vmul.f32 %v1423, %v2709
    %v2740 = vmul.f32 %v1424, %v2710
    %v2741 = vmul.f32 %v1425, %v2704
    %v2742 = vmul.f32 %v1426, %v2711
    %v2743 = vmul.f32 %v1427, %v2712
    %v2744 = vmul.f32 %v1428, %v2713
    %v2745 = vmul.f32 %v1429, %v2714
    %v2746 = vmul.f32 %v1430, %v2715
    %v2747 = vmul.f32 %v1431, %v2716
    %v2748 = vmul.f32 %v1432, %v2717
    %v2749 = vmul.f32 %v1433, %v2707
    %v2750 = vmul.f32 %v1434, %v2718
    %v2751 = vmul.f32 %v1435, %v2719
    %v2752 = vmul.f32 %v1436, %v2720
    %v2753 = vmul.f32 %v1437, %v2721
    %v2770 = vrot.slane %v2738, 3
    %v2771 = vrot.slane %v2739, 3
    %v2772 = vrot.slane %v2740, 3
    %v2773 = vrot.slane %v2741, 3
    %v2774 = vrot.slane %v2742, 3
    %v2775 = vrot.slane %v2743, 3
    %v2776 = vrot.slane %v2744, 3
    %v2777 = vrot.slane %v2745, 3
    %v2778 = vrot.slane %v2746, 3
    %v2779 = vrot.slane %v2747, 3
    %v2780 = vrot.slane %v2748, 3
    %v2781 = vrot.slane %v2749, 3
    %v2782 = vrot.slane %v2750, 3
    %v2783 = vrot.slane %v2751, 3
    %v2784 = vrot.slane %v2752, 3
    %v2785 = vrot.slane %v2753, 3
    %v2802 = vadd.f32 %v2686, %v2770
    %v2803 = vadd.f32 %v2687, %v2771
    %v2804 = vadd.f32 %v2688, %v2772
    %v2805 = vadd.f32 %v2689, %v2773
    %v2806 = vadd.f32 %v2690, %v2774
    %v2807 = vadd.f32 %v2691, %v2775
    %v2808 = vadd.f32 %v2692, %v2776
    %v2809 = vadd.f32 %v2693, %v2777
    %v2810 = vadd.f32 %v2694, %v2778
    %v2811 = vadd.f32 %v2695, %v2779
    %v2812 = vadd.f32 %v2696, %v2780
    %v2813 = vadd.f32 %v2697, %v2781
    %v2814 = vadd.f32 %v2698, %v2782
    %v2815 = vadd.f32 %v2699, %v2783
    %v2816 = vadd.f32 %v2700, %v2784
    %v2817 = vadd.f32 %v2701, %v2785
    %2818 = vset.pattern.permute.xlu0 4
    %2819 = vperm.xlu0 %2818, %v2398
    %v2820 = vpop.permute.xlu0 %2819
    %2821 = vset.pattern.permute.xlu0 4
    %2822 = vperm.xlu0 %2821, %v2399
    %v2823 = vpop.permute.xlu0 %2822
    %v2824 = vrot.slane %v2820, 4
    %v2825 = vrot.slane %v2820, 5
    %v2826 = vrot.slane %v2820, 6
    %v2827 = vrot.slane %v2820, 7
    %v2828 = vrot.slane %v2820, 1
    %v2829 = vrot.slane %v2820, 2
    %v2830 = vrot.slane %v2820, 3
    %v2831 = vrot.slane %v2823, 4
    %v2832 = vrot.slane %v2823, 5
    %v2833 = vrot.slane %v2823, 6
    %v2834 = vrot.slane %v2823, 7
    %v2835 = vrot.slane %v2823, 1
    %v2836 = vrot.slane %v2823, 2
    %v2837 = vrot.slane %v2823, 3
    %v2854 = vmul.f32 %v1422, %v2824
    %v2855 = vmul.f32 %v1423, %v2825
    %v2856 = vmul.f32 %v1424, %v2826
    %v2857 = vmul.f32 %v1425, %v2827
    %v2858 = vmul.f32 %v1426, %v2820
    %v2859 = vmul.f32 %v1427, %v2828
    %v2860 = vmul.f32 %v1428, %v2829
    %v2861 = vmul.f32 %v1429, %v2830
    %v2862 = vmul.f32 %v1430, %v2831
    %v2863 = vmul.f32 %v1431, %v2832
    %v2864 = vmul.f32 %v1432, %v2833
    %v2865 = vmul.f32 %v1433, %v2834
    %v2866 = vmul.f32 %v1434, %v2823
    %v2867 = vmul.f32 %v1435, %v2835
    %v2868 = vmul.f32 %v1436, %v2836
    %v2869 = vmul.f32 %v1437, %v2837
    %v2886 = vrot.slane %v2854, 4
    %v2887 = vrot.slane %v2855, 4
    %v2888 = vrot.slane %v2856, 4
    %v2889 = vrot.slane %v2857, 4
    %v2890 = vrot.slane %v2858, 4
    %v2891 = vrot.slane %v2859, 4
    %v2892 = vrot.slane %v2860, 4
    %v2893 = vrot.slane %v2861, 4
    %v2894 = vrot.slane %v2862, 4
    %v2895 = vrot.slane %v2863, 4
    %v2896 = vrot.slane %v2864, 4
    %v2897 = vrot.slane %v2865, 4
    %v2898 = vrot.slane %v2866, 4
    %v2899 = vrot.slane %v2867, 4
    %v2900 = vrot.slane %v2868, 4
    %v2901 = vrot.slane %v2869, 4
    %v2918 = vadd.f32 %v2802, %v2886
    %v2919 = vadd.f32 %v2803, %v2887
    %v2920 = vadd.f32 %v2804, %v2888
    %v2921 = vadd.f32 %v2805, %v2889
    %v2922 = vadd.f32 %v2806, %v2890
    %v2923 = vadd.f32 %v2807, %v2891
    %v2924 = vadd.f32 %v2808, %v2892
    %v2925 = vadd.f32 %v2809, %v2893
    %v2926 = vadd.f32 %v2810, %v2894
    %v2927 = vadd.f32 %v2811, %v2895
    %v2928 = vadd.f32 %v2812, %v2896
    %v2929 = vadd.f32 %v2813, %v2897
    %v2930 = vadd.f32 %v2814, %v2898
    %v2931 = vadd.f32 %v2815, %v2899
    %v2932 = vadd.f32 %v2816, %v2900
    %v2933 = vadd.f32 %v2817, %v2901
    %2934 = vset.pattern.permute.xlu0 5
    %2935 = vperm.xlu0 %2934, %v2398
    %v2936 = vpop.permute.xlu0 %2935
    %2937 = vset.pattern.permute.xlu0 5
    %2938 = vperm.xlu0 %2937, %v2399
    %v2939 = vpop.permute.xlu0 %2938
    %v2940 = vrot.slane %v2936, 3
    %v2941 = vrot.slane %v2936, 4
    %v2942 = vrot.slane %v2936, 5
    %v2943 = vrot.slane %v2936, 6
    %v2944 = vrot.slane %v2936, 7
    %v2945 = vrot.slane %v2936, 1
    %v2946 = vrot.slane %v2936, 2
    %v2947 = vrot.slane %v2939, 3
    %v2948 = vrot.slane %v2939, 4
    %v2949 = vrot.slane %v2939, 5
    %v2950 = vrot.slane %v2939, 6
    %v2951 = vrot.slane %v2939, 7
    %v2952 = vrot.slane %v2939, 1
    %v2953 = vrot.slane %v2939, 2
    %v2970 = vmul.f32 %v1422, %v2940
    %v2971 = vmul.f32 %v1423, %v2941
    %v2972 = vmul.f32 %v1424, %v2942
    %v2973 = vmul.f32 %v1425, %v2943
    %v2974 = vmul.f32 %v1426, %v2944
    %v2975 = vmul.f32 %v1427, %v2936
    %v2976 = vmul.f32 %v1428, %v2945
    %v2977 = vmul.f32 %v1429, %v2946
    %v2978 = vmul.f32 %v1430, %v2947
    %v2979 = vmul.f32 %v1431, %v2948
    %v2980 = vmul.f32 %v1432, %v2949
    %v2981 = vmul.f32 %v1433, %v2950
    %v2982 = vmul.f32 %v1434, %v2951
    %v2983 = vmul.f32 %v1435, %v2939
    %v2984 = vmul.f32 %v1436, %v2952
    %v2985 = vmul.f32 %v1437, %v2953
    %v3002 = vrot.slane %v2970, 5
    %v3003 = vrot.slane %v2971, 5
    %v3004 = vrot.slane %v2972, 5
    %v3005 = vrot.slane %v2973, 5
    %v3006 = vrot.slane %v2974, 5
    %v3007 = vrot.slane %v2975, 5
    %v3008 = vrot.slane %v2976, 5
    %v3009 = vrot.slane %v2977, 5
    %v3010 = vrot.slane %v2978, 5
    %v3011 = vrot.slane %v2979, 5
    %v3012 = vrot.slane %v2980, 5
    %v3013 = vrot.slane %v2981, 5
    %v3014 = vrot.slane %v2982, 5
    %v3015 = vrot.slane %v2983, 5
    %v3016 = vrot.slane %v2984, 5
    %v3017 = vrot.slane %v2985, 5
    %v3034 = vadd.f32 %v2918, %v3002
    %v3035 = vadd.f32 %v2919, %v3003
    %v3036 = vadd.f32 %v2920, %v3004
    %v3037 = vadd.f32 %v2921, %v3005
    %v3038 = vadd.f32 %v2922, %v3006
    %v3039 = vadd.f32 %v2923, %v3007
    %v3040 = vadd.f32 %v2924, %v3008
    %v3041 = vadd.f32 %v2925, %v3009
    %v3042 = vadd.f32 %v2926, %v3010
    %v3043 = vadd.f32 %v2927, %v3011
    %v3044 = vadd.f32 %v2928, %v3012
    %v3045 = vadd.f32 %v2929, %v3013
    %v3046 = vadd.f32 %v2930, %v3014
    %v3047 = vadd.f32 %v2931, %v3015
    %v3048 = vadd.f32 %v2932, %v3016
    %v3049 = vadd.f32 %v2933, %v3017
    %3050 = vset.pattern.permute.xlu0 6
    %3051 = vperm.xlu0 %3050, %v2398
    %v3052 = vpop.permute.xlu0 %3051
    %3053 = vset.pattern.permute.xlu0 6
    %3054 = vperm.xlu0 %3053, %v2399
    %v3055 = vpop.permute.xlu0 %3054
    %v3056 = vrot.slane %v3052, 2
    %v3057 = vrot.slane %v3052, 3
    %v3058 = vrot.slane %v3052, 4
    %v3059 = vrot.slane %v3052, 5
    %v3060 = vrot.slane %v3052, 6
    %v3061 = vrot.slane %v3052, 7
    %v3062 = vrot.slane %v3052, 1
    %v3063 = vrot.slane %v3055, 2
    %v3064 = vrot.slane %v3055, 3
    %v3065 = vrot.slane %v3055, 4
    %v3066 = vrot.slane %v3055, 5
    %v3067 = vrot.slane %v3055, 6
    %v3068 = vrot.slane %v3055, 7
    %v3069 = vrot.slane %v3055, 1
    %v3086 = vmul.f32 %v1422, %v3056
    %v3087 = vmul.f32 %v1423, %v3057
    %v3088 = vmul.f32 %v1424, %v3058
    %v3089 = vmul.f32 %v1425, %v3059
    %v3090 = vmul.f32 %v1426, %v3060
    %v3091 = vmul.f32 %v1427, %v3061
    %v3092 = vmul.f32 %v1428, %v3052
    %v3093 = vmul.f32 %v1429, %v3062
    %v3094 = vmul.f32 %v1430, %v3063
    %v3095 = vmul.f32 %v1431, %v3064
    %v3096 = vmul.f32 %v1432, %v3065
    %v3097 = vmul.f32 %v1433, %v3066
    %v3098 = vmul.f32 %v1434, %v3067
    %v3099 = vmul.f32 %v1435, %v3068
    %v3100 = vmul.f32 %v1436, %v3055
    %v3101 = vmul.f32 %v1437, %v3069
    %v3118 = vrot.slane %v3086, 6
    %v3119 = vrot.slane %v3087, 6
    %v3120 = vrot.slane %v3088, 6
    %v3121 = vrot.slane %v3089, 6
    %v3122 = vrot.slane %v3090, 6
    %v3123 = vrot.slane %v3091, 6
    %v3124 = vrot.slane %v3092, 6
    %v3125 = vrot.slane %v3093, 6
    %v3126 = vrot.slane %v3094, 6
    %v3127 = vrot.slane %v3095, 6
    %v3128 = vrot.slane %v3096, 6
    %v3129 = vrot.slane %v3097, 6
    %v3130 = vrot.slane %v3098, 6
    %v3131 = vrot.slane %v3099, 6
    %v3132 = vrot.slane %v3100, 6
    %v3133 = vrot.slane %v3101, 6
    %v3150 = vadd.f32 %v3034, %v3118
    %v3151 = vadd.f32 %v3035, %v3119
    %v3152 = vadd.f32 %v3036, %v3120
    %v3153 = vadd.f32 %v3037, %v3121
    %v3154 = vadd.f32 %v3038, %v3122
    %v3155 = vadd.f32 %v3039, %v3123
    %v3156 = vadd.f32 %v3040, %v3124
    %v3157 = vadd.f32 %v3041, %v3125
    %v3158 = vadd.f32 %v3042, %v3126
    %v3159 = vadd.f32 %v3043, %v3127
    %v3160 = vadd.f32 %v3044, %v3128
    %v3161 = vadd.f32 %v3045, %v3129
    %v3162 = vadd.f32 %v3046, %v3130
    %v3163 = vadd.f32 %v3047, %v3131
    %v3164 = vadd.f32 %v3048, %v3132
    %v3165 = vadd.f32 %v3049, %v3133
    %3166 = vset.pattern.permute.xlu0 7
    %3167 = vperm.xlu0 %3166, %v2398
    %v3168 = vpop.permute.xlu0 %3167
    %3169 = vset.pattern.permute.xlu0 7
    %3170 = vperm.xlu0 %3169, %v2399
    %v3171 = vpop.permute.xlu0 %3170
    %v3172 = vrot.slane %v3168, 1
    %v3173 = vrot.slane %v3168, 2
    %v3174 = vrot.slane %v3168, 3
    %v3175 = vrot.slane %v3168, 4
    %v3176 = vrot.slane %v3168, 5
    %v3177 = vrot.slane %v3168, 6
    %v3178 = vrot.slane %v3168, 7
    %v3179 = vrot.slane %v3171, 1
    %v3180 = vrot.slane %v3171, 2
    %v3181 = vrot.slane %v3171, 3
    %v3182 = vrot.slane %v3171, 4
    %v3183 = vrot.slane %v3171, 5
    %v3184 = vrot.slane %v3171, 6
    %v3185 = vrot.slane %v3171, 7
    %v3202 = vmul.f32 %v1422, %v3172
    %v3203 = vmul.f32 %v1423, %v3173
    %v3204 = vmul.f32 %v1424, %v3174
    %v3205 = vmul.f32 %v1425, %v3175
    %v3206 = vmul.f32 %v1426, %v3176
    %v3207 = vmul.f32 %v1427, %v3177
    %v3208 = vmul.f32 %v1428, %v3178
    %v3209 = vmul.f32 %v1429, %v3168
    %v3210 = vmul.f32 %v1430, %v3179
    %v3211 = vmul.f32 %v1431, %v3180
    %v3212 = vmul.f32 %v1432, %v3181
    %v3213 = vmul.f32 %v1433, %v3182
    %v3214 = vmul.f32 %v1434, %v3183
    %v3215 = vmul.f32 %v1435, %v3184
    %v3216 = vmul.f32 %v1436, %v3185
    %v3217 = vmul.f32 %v1437, %v3171
    %v3234 = vrot.slane %v3202, 7
    %v3235 = vrot.slane %v3203, 7
    %v3236 = vrot.slane %v3204, 7
    %v3237 = vrot.slane %v3205, 7
    %v3238 = vrot.slane %v3206, 7
    %v3239 = vrot.slane %v3207, 7
    %v3240 = vrot.slane %v3208, 7
    %v3241 = vrot.slane %v3209, 7
    %v3242 = vrot.slane %v3210, 7
    %v3243 = vrot.slane %v3211, 7
    %v3244 = vrot.slane %v3212, 7
    %v3245 = vrot.slane %v3213, 7
    %v3246 = vrot.slane %v3214, 7
    %v3247 = vrot.slane %v3215, 7
    %v3248 = vrot.slane %v3216, 7
    %v3249 = vrot.slane %v3217, 7
    %v3266 = vadd.f32 %v3150, %v3234
    %v3267 = vadd.f32 %v3151, %v3235
    %v3268 = vadd.f32 %v3152, %v3236
    %v3269 = vadd.f32 %v3153, %v3237
    %v3270 = vadd.f32 %v3154, %v3238
    %v3271 = vadd.f32 %v3155, %v3239
    %v3272 = vadd.f32 %v3156, %v3240
    %v3273 = vadd.f32 %v3157, %v3241
    %v3274 = vadd.f32 %v3158, %v3242
    %v3275 = vadd.f32 %v3159, %v3243
    %v3276 = vadd.f32 %v3160, %v3244
    %v3277 = vadd.f32 %v3161, %v3245
    %v3278 = vadd.f32 %v3162, %v3246
    %v3279 = vadd.f32 %v3163, %v3247
    %v3280 = vadd.f32 %v3164, %v3248
    %v3281 = vadd.f32 %v3165, %v3249
    %v3298 = vrot.slane %v3267, 7
    %v3299 = vsel %vm1464, %v3298, %v3266
    %v3300 = vrot.slane %v3268, 6
    %v3301 = vsel %vm1467, %v3300, %v3299
    %v3302 = vrot.slane %v3269, 5
    %v3303 = vsel %vm1470, %v3302, %v3301
    %v3304 = vrot.slane %v3270, 4
    %v3305 = vsel %vm1473, %v3304, %v3303
    %v3306 = vrot.slane %v3271, 3
    %v3307 = vsel %vm1476, %v3306, %v3305
    %v3308 = vrot.slane %v3272, 2
    %v3309 = vsel %vm1479, %v3308, %v3307
    %v3310 = vrot.slane %v3273, 1
    %v3311 = vsel %vm1482, %v3310, %v3309
    %v3312 = vrot.slane %v3275, 7
    %v3313 = vsel %vm1464, %v3312, %v3274
    %v3314 = vrot.slane %v3276, 6
    %v3315 = vsel %vm1467, %v3314, %v3313
    %v3316 = vrot.slane %v3277, 5
    %v3317 = vsel %vm1470, %v3316, %v3315
    %v3318 = vrot.slane %v3278, 4
    %v3319 = vsel %vm1473, %v3318, %v3317
    %v3320 = vrot.slane %v3279, 3
    %v3321 = vsel %vm1476, %v3320, %v3319
    %v3322 = vrot.slane %v3280, 2
    %v3323 = vsel %vm1479, %v3322, %v3321
    %v3324 = vrot.slane %v3281, 1
    %v3325 = vsel %vm1482, %v3324, %v3323
    %3328 = vst.msk [vmem:[#allocation2] sm:$0xff] %vm304, %v3311
    %3329 = vst.msk [vmem:[#allocation2 + $0x8] sm:$0xff] %vm304, %v3325
    // Predicated region
    $region38: #{tpu_custom_call.1} parent=1 // pred_check
      _
    $region39: #{tpu_custom_call.1} parent=1 // pred_check_branch
      %3331 = sbr.rel (0) target = $region41
    $region40: #{tpu_custom_call.1} parent=1 // pred_region
      %s3333 = ssub.s32 256, 256
      %3334 = vsyncadd [#allocation3], %s3333
      %s3335 = sshll.u32 [#allocation2], 4
      %s3336 = int_to_ptr.vmem [resolvable:$true] %s3335
      %3341 = dma.vmem_to_hbm [thread:$0]  %s3336, 256, %s9, [#allocation3], 128, 128, 8
    $region41: #{tpu_custom_call.1} parent=1 // pred_fallthru
      _
    // Predicated region
    $region42: #{tpu_custom_call.1} parent=1 // pred_check
      _
    $region43: #{tpu_custom_call.1} parent=1 // pred_check_branch
      %3343 = sbr.rel (0) target = $region45
    $region44: #{tpu_custom_call.1} parent=1 // pred_region
      %3344 = dma.done [#allocation3], 256
    $region45: #{tpu_custom_call.1} parent=1 // pred_fallthru
      _
    %3345 = vsyncpa [#allocation3], 1

</llo_original>
